<compile_context>
chip_gen: v7x
topology: tpu7x:2x2x1
jax: 0.10.0
libtpu: 0.0.40
codegen_flags: <defaults>
</compile_context>

<pallas_src>
import functools

import jax
import jax.numpy as jnp
from jax.experimental import pallas as pl
from jax.experimental.pallas import tpu as pltpu

IN_DIM = 36 * 3   # 108
IN_PAD = 128      # K zero-padded so x loads / MXU K tiles are (8,128)-aligned
HIDDEN = 512
OUT_DIM = 1


def _round_up(x, m):
    return (x + m - 1) // m * m


def mlp_kernel(x_ref, w1_ref, b1_ref, w2_ref, b2_ref, w3_ref, b3_ref, o_ref):
    # fc1 + ReLU   (Dropout(0.2) is identity at inference)
    h1 = jnp.dot(x_ref[...], w1_ref[...], preferred_element_type=jnp.float32)
    h1 = jnp.maximum(h1 + b1_ref[...], 0.0)
    # fc2 + ReLU
    h2 = jnp.dot(h1.astype(w2_ref.dtype), w2_ref[...],
                 preferred_element_type=jnp.float32)
    h2 = jnp.maximum(h2 + b2_ref[...], 0.0)
    # fc3: single output column -> VPU multiply + lane reduce (frees the MXU
    # from a 99%-zero matmul) stored as a (tb, 1) column so the writeback is
    # compact.  w3/b3 stay f32 (keeps elementwise math f32 -- required on v5e).
    s = jnp.sum(h2 * w3_ref[...], axis=-1, keepdims=True)      # (tb, 1) f32
    o_ref[...] = (s + b3_ref[...]).astype(o_ref.dtype)
    # TODO(synk): training-mode Dropout(0.2) would need pltpu.prng_seed /
    # pltpu.stateful_bernoulli; forward() here is eval-mode (identity dropout).


def pack_params(params, compute_dtype=jnp.float32):
    """One-time packing: pad / cast weights once, outside the forward call.

    compute_dtype=f32 (default) reproduces the PyTorch module's semantics;
    compute_dtype=bf16 halves the dominant weight DMA and uses the bf16 MXU
    path (recommended on v6e/v7x).  Biases, w3 and all elementwise math stay
    f32 in the kernel regardless.
    """
    w1, b1, w2, b2, w3, b3 = params
    w1p = (jnp.zeros((IN_PAD, HIDDEN), compute_dtype)
           .at[:IN_DIM, :].set(w1.astype(compute_dtype)))
    w2c = w2.astype(compute_dtype)
    w3r = w3.reshape(1, HIDDEN).astype(jnp.float32)   # single output column
    b1f = b1.reshape(1, HIDDEN).astype(jnp.float32)
    b2f = b2.reshape(1, HIDDEN).astype(jnp.float32)
    b3f = b3.reshape(1, OUT_DIM).astype(jnp.float32)
    return (w1p, b1f, w2c, b2f, w3r, b3f)


@functools.partial(jax.jit, static_argnames=("block_b",))
def mlp_forward(x, packed, *, block_b=512):
    w1p, b1f, w2c, b2f, w3r, b3f = packed
    B = x.shape[0]
    cdt = w1p.dtype

    # Batch tile: multiple of 128 (full 128-wide MXU passes, unmasked loads),
    # large by default to amortize per-grid-step overhead, but capped so there
    # are >= 2 grid tiles whenever the padded batch allows it (v7x megacore).
    b128 = _round_up(B, 128)
    tb = min(block_b, b128)
    if b128 >= 256:
        tb = min(tb, _round_up(b128 // 2, 128))
    b_pad = _round_up(B, tb)
    n_tiles = b_pad // tb

    # Pad batch and K (108 -> 128) directly in the compute dtype.
    xp = (jnp.zeros((b_pad, IN_PAD), cdt)
          .at[:B, :IN_DIM].set(x.astype(cdt)))

    resident = lambda shape: pl.BlockSpec(shape, lambda i: (0,) * len(shape))

    flops = 2 * b_pad * (IN_PAD * HIDDEN + HIDDEN * HIDDEN + HIDDEN)
    bytes_accessed = (
        xp.size * xp.dtype.itemsize
        + w1p.size * w1p.dtype.itemsize
        + w2c.size * w2c.dtype.itemsize
        + (b1f.size + b2f.size + w3r.size + b3f.size) * 4
        + b_pad * OUT_DIM * 4
    )

    out = pl.pallas_call(
        mlp_kernel,
        out_shape=jax.ShapeDtypeStruct((b_pad, OUT_DIM), jnp.float32),
        grid=(n_tiles,),
        in_specs=[
            pl.BlockSpec((tb, IN_PAD), lambda i: (i, 0)),   # x tile (pipelined)
            resident((IN_PAD, HIDDEN)),                     # w1 (resident)
            resident((1, HIDDEN)),                          # b1 (f32)
            resident((HIDDEN, HIDDEN)),                     # w2 (resident)
            resident((1, HIDDEN)),                          # b2 (f32)
            resident((1, HIDDEN)),                          # w3 row (f32)
            resident((1, OUT_DIM)),                         # b3 (f32)
        ],
        out_specs=pl.BlockSpec((tb, OUT_DIM), lambda i: (i, 0)),
        compiler_params=pltpu.CompilerParams(
            dimension_semantics=("parallel",),
            vmem_limit_bytes=32 << 20,
        ),
        cost_estimate=pl.CostEstimate(
            flops=flops, transcendentals=0, bytes_accessed=bytes_accessed),
    )(xp, w1p, b1f, w2c, b2f, w3r, b3f)

    return out[:B]


def init_params(key):
    """Deterministic init mimicking nn.Linear's uniform(-1/sqrt(fan_in), +...)."""
    def linear(key, fan_in, fan_out):
        kw, kb = jax.random.split(key)
        bound = 1.0 / jnp.sqrt(fan_in)
        # stored as (in_features, out_features) -- pre-transposed vs PyTorch
        w = jax.random.uniform(kw, (fan_in, fan_out), jnp.float32, -bound, bound)
        b = jax.random.uniform(kb, (1, fan_out), jnp.float32, -bound, bound)
        return w, b

    k1, k2, k3 = jax.random.split(key, 3)
    w1, b1 = linear(k1, IN_DIM, HIDDEN)
    w2, b2 = linear(k2, HIDDEN, HIDDEN)
    w3, b3 = linear(k3, HIDDEN, OUT_DIM)
    return (w1, b1, w2, b2, w3, b3)


def mlp_reference(x, params):
    w1, b1, w2, b2, w3, b3 = params
    h1 = jnp.maximum(x @ w1 + b1, 0.0)
    h2 = jnp.maximum(h1 @ w2 + b2, 0.0)
    return h2 @ w3 + b3


if __name__ == "__main__":
    key = jax.random.PRNGKey(0)
    kx, kp = jax.random.split(key)

    B = 200  # > 128 so the 2-tile parallel batch grid is exercised
    x = jax.random.normal(kx, (B, IN_DIM), jnp.float32)
    params = init_params(kp)

    ref = mlp_reference(x, params)

    # f32 pack (default): parity with the PyTorch module's semantics.
    packed_f32 = pack_params(params, jnp.float32)
    out_f32 = jax.block_until_ready(mlp_forward(x, packed_f32))
    assert out_f32.shape == (B, OUT_DIM), out_f32.shape
    assert jnp.allclose(out_f32, ref, atol=1e-3, rtol=1e-3), "f32 mismatch"

    # bf16 MXU operands (recommended perf path on v6e/v7x): f32 accumulation,
    # f32 bias/ReLU/fc3, only the matmul operands are rounded.
    packed_bf16 = pack_params(params, jnp.bfloat16)
    out_bf16 = jax.block_until_ready(mlp_forward(x, packed_bf16))
    assert out_bf16.shape == (B, OUT_DIM), out_bf16.shape
    assert jnp.allclose(out_bf16, ref, atol=5e-2, rtol=5e-2), "bf16 mismatch"

    print("KERNEL_OK")
</pallas_src>

<mosaic_0001>
module attributes {stable_mosaic.version = 11 : i64} {
  func.func @mlp_kernel(%arg0: i32, %arg1: memref<128x128xf32, #tpu.memory_space<vmem>>, %arg2: memref<128x512xf32, #tpu.memory_space<vmem>>, %arg3: memref<1x512xf32, #tpu.memory_space<vmem>>, %arg4: memref<512x512xf32, #tpu.memory_space<vmem>>, %arg5: memref<1x512xf32, #tpu.memory_space<vmem>>, %arg6: memref<1x512xf32, #tpu.memory_space<vmem>>, %arg7: memref<1x1xf32, #tpu.memory_space<vmem>>, %arg8: memref<128x1xf32, #tpu.memory_space<vmem>>) attributes {dimension_semantics = [#tpu.dimension_semantics<parallel>], iteration_bounds = array<i64: 2>, scalar_prefetch = 0 : i64, scratch_operands = 0 : i64, tpu.core_type = #tpu.core_type<tc>, window_params = [{transform_indices = @transform_0, window_bounds = array<i64: 128, 128>}, {pipeline_mode = #tpu.pipeline_mode<synchronous>, transform_indices = @transform_1, window_bounds = array<i64: 128, 512>}, {pipeline_mode = #tpu.pipeline_mode<synchronous>, transform_indices = @transform_2, window_bounds = array<i64: 1, 512>}, {pipeline_mode = #tpu.pipeline_mode<synchronous>, transform_indices = @transform_3, window_bounds = array<i64: 512, 512>}, {pipeline_mode = #tpu.pipeline_mode<synchronous>, transform_indices = @transform_4, window_bounds = array<i64: 1, 512>}, {pipeline_mode = #tpu.pipeline_mode<synchronous>, transform_indices = @transform_5, window_bounds = array<i64: 1, 512>}, {pipeline_mode = #tpu.pipeline_mode<synchronous>, transform_indices = @transform_6, window_bounds = array<i64: 1, 1>}, {transform_indices = @transform_7, window_bounds = array<i64: 128, 1>}]} {
    %c0 = arith.constant 0 : index
    %c0_0 = arith.constant 0 : index
    %0 = vector.load %arg1[%c0, %c0_0] : memref<128x128xf32, #tpu.memory_space<vmem>>, vector<128x128xf32>
    %c0_1 = arith.constant 0 : index
    %c0_2 = arith.constant 0 : index
    %1 = vector.load %arg2[%c0_1, %c0_2] : memref<128x512xf32, #tpu.memory_space<vmem>>, vector<128x512xf32>
    %cst = arith.constant dense<0.000000e+00> : vector<128x512xf32>
    %2 = tpu.matmul %0, %1, %cst {dimension_numbers = #tpu.dot_dimension_numbers<[1], [0], [0], [1], [0, 0, 1, 1], [], []>} : vector<128x128xf32>, vector<128x512xf32>, vector<128x512xf32> -> vector<128x512xf32>
    %c0_3 = arith.constant 0 : index
    %c0_4 = arith.constant 0 : index
    %3 = vector.load %arg3[%c0_3, %c0_4] : memref<1x512xf32, #tpu.memory_space<vmem>>, vector<1x512xf32>
    %4 = vector.broadcast %3 : vector<1x512xf32> to vector<128x512xf32>
    %5 = arith.addf %2, %4 : vector<128x512xf32>
    %cst_5 = arith.constant 0.000000e+00 : f32
    %6 = vector.broadcast %cst_5 : f32 to vector<128x512xf32>
    %7 = arith.maximumf %5, %6 : vector<128x512xf32>
    %c0_6 = arith.constant 0 : index
    %c0_7 = arith.constant 0 : index
    %8 = vector.load %arg4[%c0_6, %c0_7] : memref<512x512xf32, #tpu.memory_space<vmem>>, vector<512x512xf32>
    %cst_8 = arith.constant dense<0.000000e+00> : vector<128x512xf32>
    %9 = tpu.matmul %7, %8, %cst_8 {dimension_numbers = #tpu.dot_dimension_numbers<[1], [0], [0], [1], [0, 0, 1, 1], [], []>} : vector<128x512xf32>, vector<512x512xf32>, vector<128x512xf32> -> vector<128x512xf32>
    %c0_9 = arith.constant 0 : index
    %c0_10 = arith.constant 0 : index
    %10 = vector.load %arg5[%c0_9, %c0_10] : memref<1x512xf32, #tpu.memory_space<vmem>>, vector<1x512xf32>
    %11 = vector.broadcast %10 : vector<1x512xf32> to vector<128x512xf32>
    %12 = arith.addf %9, %11 : vector<128x512xf32>
    %cst_11 = arith.constant 0.000000e+00 : f32
    %13 = vector.broadcast %cst_11 : f32 to vector<128x512xf32>
    %14 = arith.maximumf %12, %13 : vector<128x512xf32>
    %c0_12 = arith.constant 0 : index
    %c0_13 = arith.constant 0 : index
    %15 = vector.load %arg6[%c0_12, %c0_13] : memref<1x512xf32, #tpu.memory_space<vmem>>, vector<1x512xf32>
    %16 = vector.broadcast %15 : vector<1x512xf32> to vector<128x512xf32>
    %17 = arith.mulf %14, %16 : vector<128x512xf32>
    %cst_14 = arith.constant dense<0.000000e+00> : vector<128xf32>
    %18 = vector.multi_reduction <add>, %17, %cst_14 [1] : vector<128x512xf32> to vector<128xf32>
    %19 = vector.shape_cast %18 : vector<128xf32> to vector<128x1xf32>
    %c0_15 = arith.constant 0 : index
    %c0_16 = arith.constant 0 : index
    %20 = vector.load %arg7[%c0_15, %c0_16] : memref<1x1xf32, #tpu.memory_space<vmem>>, vector<1x1xf32>
    %21 = vector.broadcast %20 : vector<1x1xf32> to vector<128x1xf32>
    %22 = arith.addf %19, %21 : vector<128x1xf32>
    %c0_17 = arith.constant 0 : index
    %c0_18 = arith.constant 0 : index
    %23 = vector.load %arg8[%c0_17, %c0_18] : memref<128x1xf32, #tpu.memory_space<vmem>>, vector<128x1xf32>
    tpu.vector_store %arg8[%c0_17, %c0_18], %22 {strides = array<i32>} : memref<128x1xf32, #tpu.memory_space<vmem>>, vector<128x1xf32>,
    return
  }
  func.func @transform_0(%arg0: i32) -> (i32, i32) {
    %c0_i32 = arith.constant 0 : i32
    %c0_i32_0 = arith.constant 0 : i32
    return %arg0, %c0_i32 : i32, i32
  }
  func.func @transform_1(%arg0: i32) -> (i32, i32) {
    %c0_i32 = arith.constant 0 : i32
    %c0_i32_0 = arith.constant 0 : i32
    %c0_i32_1 = arith.constant 0 : i32
    return %c0_i32, %c0_i32_0 : i32, i32
  }
  func.func @transform_2(%arg0: i32) -> (i32, i32) {
    %c0_i32 = arith.constant 0 : i32
    %c0_i32_0 = arith.constant 0 : i32
    %c0_i32_1 = arith.constant 0 : i32
    return %c0_i32, %c0_i32_0 : i32, i32
  }
  func.func @transform_3(%arg0: i32) -> (i32, i32) {
    %c0_i32 = arith.constant 0 : i32
    %c0_i32_0 = arith.constant 0 : i32
    %c0_i32_1 = arith.constant 0 : i32
    return %c0_i32, %c0_i32_0 : i32, i32
  }
  func.func @transform_4(%arg0: i32) -> (i32, i32) {
    %c0_i32 = arith.constant 0 : i32
    %c0_i32_0 = arith.constant 0 : i32
    %c0_i32_1 = arith.constant 0 : i32
    return %c0_i32, %c0_i32_0 : i32, i32
  }
  func.func @transform_5(%arg0: i32) -> (i32, i32) {
    %c0_i32 = arith.constant 0 : i32
    %c0_i32_0 = arith.constant 0 : i32
    %c0_i32_1 = arith.constant 0 : i32
    return %c0_i32, %c0_i32_0 : i32, i32
  }
  func.func @transform_6(%arg0: i32) -> (i32, i32) {
    %c0_i32 = arith.constant 0 : i32
    %c0_i32_0 = arith.constant 0 : i32
    %c0_i32_1 = arith.constant 0 : i32
    return %c0_i32, %c0_i32_0 : i32, i32
  }
  func.func @transform_7(%arg0: i32) -> (i32, i32) {
    %c0_i32 = arith.constant 0 : i32
    %c0_i32_0 = arith.constant 0 : i32
    return %arg0, %c0_i32 : i32, i32
  }
}

</mosaic_0001>

<llo_original>
// kernel: mlp_forward.1
$region0: #{mlp_forward.1}
  #allocation0 [shape = 'u32[]', space=smem, size = 0x4, offset = 0x4, fixed_abs, tag = 'smem constant byte address 0x4 - core index']
  #allocation1 [shape = 'u32[144,128]{1,0:T(1,128)}', space=vmem, size = 0x12000, scoped, tag = 'internal scratch']
  #allocation2 [shape = 'f32[1,1]{1,0:T(1,128)S(1)}', space=vmem, size = 0x200, scoped, tag = 'scoped memory for mlp_forward.1']
  %s0 = inlined_call_operand.vmem [shape: f32[256,128], index: 0, kind: input, shape index: {}]
  %s1 = inlined_call_operand.hbm [shape: f32[128,512], index: 1, kind: input, shape index: {}]
  %s2 = inlined_call_operand.vmem [shape: f32[1,512], index: 2, kind: input, shape index: {}]
  %s3 = inlined_call_operand.hbm [shape: f32[512,512], index: 3, kind: input, shape index: {}]
  %s4 = inlined_call_operand.vmem [shape: f32[1,512], index: 4, kind: input, shape index: {}]
  %s5 = inlined_call_operand.vmem [shape: f32[1,512], index: 5, kind: input, shape index: {}]
  %s6 = inlined_call_operand.<no memory space> [shape: f32[1,1], index: 6, kind: input, shape index: {}]
  %s7 = inlined_call_operand.vmem [shape: f32[256,1], index: 7, kind: output, shape index: {}]
  %s8 = sld [smem:[#allocation0]]
  $region69: #{mlp_forward.1} parent=0
    _
  %s10 = ssub.s32 1, %s8
  %s11 = scalar_select 0, %s10, %s8
  %v12 = vstv %s6
  %13 = vst [vmem:[#allocation2] sm:$0x1] %v12
  $region1: #{mlp_forward.1} parent=0
    #allocation3 [shape = 'u8[262144]{0}', space=vmem, size = 0x40000, scoped, tag = 'input window, operand 1, single buffered']
    #allocation4 [shape = 's32[2]{0}', space=sflag, size = 0x8, scoped, tag = 'scoped memory for mlp_forward.1']
    #allocation5 [shape = 'u8[1048576]{0}', space=vmem, size = 0x100000, scoped, tag = 'input window, operand 3, single buffered']
    #allocation6 [shape = 's32[1]{0}', space=sflag, size = 0x4, scoped, tag = 'scoped memory for mlp_forward.1']
    %14 = vsyncpa [#allocation4], 0
    %15 = vsyncpa [#allocation6], 0
    loop: start=0, step=1, limit=4
    $region2: #{mlp_forward.1} parent=1 // loop_pre_header
      _
    $region3: #{mlp_forward.1} parent=1 // loop_header
      %s17 = sphi 0, %s21
      %p18 = scmp.ge.s32.totalorder %s17, 4
      %s27 = sphi 0, %s29
      %s30 = sphi 0, %s27
      %s31 = sphi 0, %s30
      %s47 = sphi 0, %s31
      %s51 = sphi 0, %s51
      %s53 = sphi 0, %s51
      %s54 = sphi 0, %s53
      %s68 = sphi 0, %s54
      %s72 = sphi 0, %s72
      %s74 = sphi 0, %s72
      %s75 = sphi 0, %s74
      %s89 = sphi 0, %s75
      %s93 = sphi 0, %s93
      %s95 = sphi 0, %s93
      %s96 = sphi 0, %s95
      %s110 = sphi 0, %s96
      %s114 = sphi 0, %s114
      %s116 = sphi 0, %s114
      %s117 = sphi 0, %s116
      %s131 = sphi 0, %s117
      %s135 = sphi 0, %s135
      %s137 = sphi 0, %s135
      %s138 = sphi 0, %s137
      %s152 = sphi 0, %s138
      %s156 = sphi 0, %s156
      %s158 = sphi 0, %s156
      %s159 = sphi 0, %s158
      %s173 = sphi 0, %s159
      %s179 = sphi 0, %s181
      %s182 = sphi 0, %s179
      %s183 = sphi 0, %s182
      %s199 = sphi 0, %s183
    $region4: #{mlp_forward.1} parent=1 // loop_header_branch
      %20 = sbr.rel (%p18) target = $region8
    $region5: #{mlp_forward.1} parent=1 // loop_body
      %s22 = ssub.s32 %s17, 1
      %s23 = ssub.s32 %s17, 2
      %s24 = sadd.s32 %s17, 1
      %s25 = ssub.s32 %s17, %s24
      %p26 = scmp.eq.s32.totalorder %s25, 0
      %s28 = sadd.s32 %s27, 1
      %s29 = scalar_select %p26, %s27, %s28
      %p32 = pneg %p26
      %p33 = scmp.eq.s32.totalorder %s17, 1
      %p34 = por %p32, %p33
      %p35 = scmp.ne.s32.totalorder %s27, %s30
      %p36 = scmp.eq.s32.totalorder %s17, 0
      %p37 = por %p35, %p36
      %p38 = scmp.ne.s32.totalorder %s27, %s30
      %p39 = scmp.eq.s32.totalorder %s22, 1
      %p40 = por %p38, %p39
      %p41 = scmp.ne.s32.totalorder %s30, %s31
      %p42 = scmp.eq.s32.totalorder %s22, 0
      %p43 = por %p41, %p42
      %p44 = scmp.ne.s32.totalorder %s30, %s31
      %p45 = scmp.eq.s32.totalorder %s23, 1
      %p46 = por %p44, %p45
      %p48 = scmp.ne.s32.totalorder %s31, %s47
      %p49 = scmp.eq.s32.totalorder %s23, 0
      %p50 = por %p48, %p49
      %s52 = sadd.s32 %s51, 1
      %p55 = scmp.eq.s32.totalorder %s17, 1
      %p56 = scmp.ne.s32.totalorder %s51, %s53
      %p57 = scmp.eq.s32.totalorder %s17, 0
      %p58 = por %p56, %p57
      %p59 = scmp.ne.s32.totalorder %s51, %s53
      %p60 = scmp.eq.s32.totalorder %s22, 1
      %p61 = por %p59, %p60
      %p62 = scmp.ne.s32.totalorder %s53, %s54
      %p63 = scmp.eq.s32.totalorder %s22, 0
      %p64 = por %p62, %p63
      %p65 = scmp.ne.s32.totalorder %s53, %s54
      %p66 = scmp.eq.s32.totalorder %s23, 1
      %p67 = por %p65, %p66
      %p69 = scmp.ne.s32.totalorder %s54, %s68
      %p70 = scmp.eq.s32.totalorder %s23, 0
      %p71 = por %p69, %p70
      %s73 = sadd.s32 %s72, 1
      %p76 = scmp.eq.s32.totalorder %s17, 1
      %p77 = scmp.ne.s32.totalorder %s72, %s74
      %p78 = scmp.eq.s32.totalorder %s17, 0
      %p79 = por %p77, %p78
      %p80 = scmp.ne.s32.totalorder %s72, %s74
      %p81 = scmp.eq.s32.totalorder %s22, 1
      %p82 = por %p80, %p81
      %p83 = scmp.ne.s32.totalorder %s74, %s75
      %p84 = scmp.eq.s32.totalorder %s22, 0
      %p85 = por %p83, %p84
      %p86 = scmp.ne.s32.totalorder %s74, %s75
      %p87 = scmp.eq.s32.totalorder %s23, 1
      %p88 = por %p86, %p87
      %p90 = scmp.ne.s32.totalorder %s75, %s89
      %p91 = scmp.eq.s32.totalorder %s23, 0
      %p92 = por %p90, %p91
      %s94 = sadd.s32 %s93, 1
      %p97 = scmp.eq.s32.totalorder %s17, 1
      %p98 = scmp.ne.s32.totalorder %s93, %s95
      %p99 = scmp.eq.s32.totalorder %s17, 0
      %p100 = por %p98, %p99
      %p101 = scmp.ne.s32.totalorder %s93, %s95
      %p102 = scmp.eq.s32.totalorder %s22, 1
      %p103 = por %p101, %p102
      %p104 = scmp.ne.s32.totalorder %s95, %s96
      %p105 = scmp.eq.s32.totalorder %s22, 0
      %p106 = por %p104, %p105
      %p107 = scmp.ne.s32.totalorder %s95, %s96
      %p108 = scmp.eq.s32.totalorder %s23, 1
      %p109 = por %p107, %p108
      %p111 = scmp.ne.s32.totalorder %s96, %s110
      %p112 = scmp.eq.s32.totalorder %s23, 0
      %p113 = por %p111, %p112
      %s115 = sadd.s32 %s114, 1
      %p118 = scmp.eq.s32.totalorder %s17, 1
      %p119 = scmp.ne.s32.totalorder %s114, %s116
      %p120 = scmp.eq.s32.totalorder %s17, 0
      %p121 = por %p119, %p120
      %p122 = scmp.ne.s32.totalorder %s114, %s116
      %p123 = scmp.eq.s32.totalorder %s22, 1
      %p124 = por %p122, %p123
      %p125 = scmp.ne.s32.totalorder %s116, %s117
      %p126 = scmp.eq.s32.totalorder %s22, 0
      %p127 = por %p125, %p126
      %p128 = scmp.ne.s32.totalorder %s116, %s117
      %p129 = scmp.eq.s32.totalorder %s23, 1
      %p130 = por %p128, %p129
      %p132 = scmp.ne.s32.totalorder %s117, %s131
      %p133 = scmp.eq.s32.totalorder %s23, 0
      %p134 = por %p132, %p133
      %s136 = sadd.s32 %s135, 1
      %p139 = scmp.eq.s32.totalorder %s17, 1
      %p140 = scmp.ne.s32.totalorder %s135, %s137
      %p141 = scmp.eq.s32.totalorder %s17, 0
      %p142 = por %p140, %p141
      %p143 = scmp.ne.s32.totalorder %s135, %s137
      %p144 = scmp.eq.s32.totalorder %s22, 1
      %p145 = por %p143, %p144
      %p146 = scmp.ne.s32.totalorder %s137, %s138
      %p147 = scmp.eq.s32.totalorder %s22, 0
      %p148 = por %p146, %p147
      %p149 = scmp.ne.s32.totalorder %s137, %s138
      %p150 = scmp.eq.s32.totalorder %s23, 1
      %p151 = por %p149, %p150
      %p153 = scmp.ne.s32.totalorder %s138, %s152
      %p154 = scmp.eq.s32.totalorder %s23, 0
      %p155 = por %p153, %p154
      %s157 = sadd.s32 %s156, 1
      %p160 = scmp.eq.s32.totalorder %s17, 1
      %p161 = scmp.ne.s32.totalorder %s156, %s158
      %p162 = scmp.eq.s32.totalorder %s17, 0
      %p163 = por %p161, %p162
      %p164 = scmp.ne.s32.totalorder %s156, %s158
      %p165 = scmp.eq.s32.totalorder %s22, 1
      %p166 = por %p164, %p165
      %p167 = scmp.ne.s32.totalorder %s158, %s159
      %p168 = scmp.eq.s32.totalorder %s22, 0
      %p169 = por %p167, %p168
      %p170 = scmp.ne.s32.totalorder %s158, %s159
      %p171 = scmp.eq.s32.totalorder %s23, 1
      %p172 = por %p170, %p171
      %p174 = scmp.ne.s32.totalorder %s159, %s173
      %p175 = scmp.eq.s32.totalorder %s23, 0
      %p176 = por %p174, %p175
      %s177 = ssub.s32 %s17, %s24
      %p178 = scmp.eq.s32.totalorder %s177, 0
      %s180 = sadd.s32 %s179, 1
      %s181 = scalar_select %p178, %s179, %s180
      %p184 = pneg %p178
      %p185 = scmp.eq.s32.totalorder %s17, 1
      %p186 = por %p184, %p185
      %p187 = scmp.ne.s32.totalorder %s179, %s182
      %p188 = scmp.eq.s32.totalorder %s17, 0
      %p189 = por %p187, %p188
      %p190 = scmp.ne.s32.totalorder %s179, %s182
      %p191 = scmp.eq.s32.totalorder %s22, 1
      %p192 = por %p190, %p191
      %p193 = scmp.ne.s32.totalorder %s182, %s183
      %p194 = scmp.eq.s32.totalorder %s22, 0
      %p195 = por %p193, %p194
      %p196 = scmp.ne.s32.totalorder %s182, %s183
      %p197 = scmp.eq.s32.totalorder %s23, 1
      %p198 = por %p196, %p197
      %p200 = scmp.ne.s32.totalorder %s183, %s199
      %p201 = scmp.eq.s32.totalorder %s23, 0
      %p202 = por %p200, %p201
      %p203 = scmp.le.s32.totalorder 1, %s17
      %p204 = scmp.lt.s32.totalorder %s17, 3
      %p205 = pnand %p203, %p204
      %p206 = pneg %p205
      // Predicated region
      $region9: #{mlp_forward.1} parent=5 // pred_check
        _
      $region10: #{mlp_forward.1} parent=5 // pred_check_branch
        %208 = sbr.rel (%p205) target = $region12
      $region11: #{mlp_forward.1} parent=5 // pred_region
        %s209 = ssub.s32 %s17, 1
        // Predicated region
        $region13: #{mlp_forward.1} parent=11 // pred_check
          %p210 = pneg %p64
        $region14: #{mlp_forward.1} parent=11 // pred_check_branch
          %212 = sbr.rel (%p210) target = $region16
        $region15: #{mlp_forward.1} parent=11 // pred_region
          %s214 = ssub.s32 8192, 8192
          %215 = vsyncadd [#allocation4], %s214
          %s216 = sshll.u32 [#allocation3], 4
          %s217 = int_to_ptr.vmem [resolvable:$true] %s216
          %222 = dma.hbm_to_vmem [thread:$0]  %s1, 8192, %s217, [#allocation4], 512, 512, 32
        $region16: #{mlp_forward.1} parent=11 // pred_fallthru
          _
        // Predicated region
        $region17: #{mlp_forward.1} parent=11 // pred_check
          %p223 = pneg %p85
        $region18: #{mlp_forward.1} parent=11 // pred_check_branch
          %225 = sbr.rel (%p223) target = $region20
        $region19: #{mlp_forward.1} parent=11 // pred_region
          _
        $region20: #{mlp_forward.1} parent=11 // pred_fallthru
          _
        // Predicated region
        $region21: #{mlp_forward.1} parent=11 // pred_check
          %p226 = pneg %p106
        $region22: #{mlp_forward.1} parent=11 // pred_check_branch
          %228 = sbr.rel (%p226) target = $region24
        $region23: #{mlp_forward.1} parent=11 // pred_region
          %s230 = ssub.s32 32768, 32768
          %231 = vsyncadd [#allocation6], %s230
          %s232 = sshll.u32 [#allocation5], 4
          %s233 = int_to_ptr.vmem [resolvable:$true] %s232
          %238 = dma.hbm_to_vmem [thread:$0]  %s3, 32768, %s233, [#allocation6], 512, 512, 32
        $region24: #{mlp_forward.1} parent=11 // pred_fallthru
          _
        // Predicated region
        $region25: #{mlp_forward.1} parent=11 // pred_check
          %p239 = pneg %p127
        $region26: #{mlp_forward.1} parent=11 // pred_check_branch
          %241 = sbr.rel (%p239) target = $region28
        $region27: #{mlp_forward.1} parent=11 // pred_region
          _
        $region28: #{mlp_forward.1} parent=11 // pred_fallthru
          _
        // Predicated region
        $region29: #{mlp_forward.1} parent=11 // pred_check
          %p242 = pneg %p148
        $region30: #{mlp_forward.1} parent=11 // pred_check_branch
          %244 = sbr.rel (%p242) target = $region32
        $region31: #{mlp_forward.1} parent=11 // pred_region
          _
        $region32: #{mlp_forward.1} parent=11 // pred_fallthru
          _
        // Predicated region
        $region33: #{mlp_forward.1} parent=11 // pred_check
          %p245 = pneg %p169
        $region34: #{mlp_forward.1} parent=11 // pred_check_branch
          %247 = sbr.rel (%p245) target = $region36
        $region35: #{mlp_forward.1} parent=11 // pred_region
          _
        $region36: #{mlp_forward.1} parent=11 // pred_fallthru
          _
      $region12: #{mlp_forward.1} parent=5 // pred_fallthru
        _
      %p248 = scmp.lt.s32.totalorder %s17, 2
      // Predicated region
      $region37: #{mlp_forward.1} parent=5 // pred_check
        %p249 = pneg %p248
      $region38: #{mlp_forward.1} parent=5 // pred_check_branch
        %251 = sbr.rel (%p249) target = $region40
      $region39: #{mlp_forward.1} parent=5 // pred_region
        // Predicated region
        $region41: #{mlp_forward.1} parent=39 // pred_check
          %p252 = pneg %p37
        $region42: #{mlp_forward.1} parent=39 // pred_check_branch
          %254 = sbr.rel (%p252) target = $region44
        $region43: #{mlp_forward.1} parent=39 // pred_region
          %s255 = smul.u32 16, %s17
          %p256 = scmp.lt.s32.totalorder %s255, 31
          %s257 = scalar_select %p256, %s255, 31
          %s258 = smul.addr %s257, 8
          %s259 = scalar_lea.vmem %s0, %s258
          %s260 = smul.u32 16, %s17
        $region44: #{mlp_forward.1} parent=39 // pred_fallthru
          _
      $region40: #{mlp_forward.1} parent=5 // pred_fallthru
        _
      %p261 = scmp.le.s32.totalorder 1, %s17
      %p262 = scmp.lt.s32.totalorder %s17, 3
      %p263 = pnand %p261, %p262
      %p264 = pneg %p263
      // Predicated region
      $region45: #{mlp_forward.1} parent=5 // pred_check
        _
      $region46: #{mlp_forward.1} parent=5 // pred_check_branch
        %266 = sbr.rel (%p263) target = $region48
      $region47: #{mlp_forward.1} parent=5 // pred_region
        %s267 = ssub.s32 %s17, 1
        // Predicated region
        $region49: #{mlp_forward.1} parent=47 // pred_check
          %p268 = pneg %p64
        $region50: #{mlp_forward.1} parent=47 // pred_check_branch
          %270 = sbr.rel (%p268) target = $region52
        $region51: #{mlp_forward.1} parent=47 // pred_region
          %271 = dma.done [#allocation4], 8192
        $region52: #{mlp_forward.1} parent=47 // pred_fallthru
          _
        // Predicated region
        $region53: #{mlp_forward.1} parent=47 // pred_check
          %p272 = pneg %p106
        $region54: #{mlp_forward.1} parent=47 // pred_check_branch
          %274 = sbr.rel (%p272) target = $region56
        $region55: #{mlp_forward.1} parent=47 // pred_region
          %275 = dma.done [#allocation6], 32768
        $region56: #{mlp_forward.1} parent=47 // pred_fallthru
          _
        %s276 = smul.u32 16, %s22
        %p277 = scmp.lt.s32.totalorder %s276, 31
        %s278 = scalar_select %p277, %s276, 31
        %s279 = smul.addr %s278, 8
        %s280 = scalar_lea.vmem %s0, %s279
        %p281 = pneg %p43
        %p282 = pneg %p40
        %p283 = pneg %p64
        %p284 = pneg %p61
        %p285 = pneg %p85
        %p286 = pneg %p82
        %p287 = pneg %p106
        %p288 = pneg %p103
        %p289 = pneg %p127
        %p290 = pneg %p124
        %p291 = pneg %p148
        %p292 = pneg %p145
        %p293 = pneg %p169
        %p294 = pneg %p166
        %p295 = pneg %p195
        %p296 = pneg %p192
        %s297 = smul.u32 16, %s22
        %p298 = scmp.lt.s32.totalorder %s297, 31
        %s299 = scalar_select %p298, %s297, 31
        %s300 = smul.addr %s299, 8
        %s301 = scalar_lea.vmem %s7, %s300
        %s302 = smul.u32 16, %s22
        %p303 = scmp.lt.s32.totalorder %s302, 31
        %s304 = scalar_select %p303, %s302, 31
        %s305 = smul.addr %s304, 8
        %s306 = scalar_lea.vmem %s0, %s305
        %s307 = smul.u32 16, %s22
        %s308 = smul.u32 16, %s22
        %p309 = scmp.lt.s32.totalorder %s308, 31
        %s310 = scalar_select %p309, %s308, 31
        %s311 = smul.addr %s310, 8
        %s312 = scalar_lea.vmem %s7, %s311
        %s313 = smul.u32 16, %s22
        %v314 = vld [vmem:[%s306] sm:$0xff]
        %v315 = vld [vmem:[%s306 + $0x8] sm:$0xff]
        %v316 = vld [vmem:[%s306 + $0x10] sm:$0xff]
        %v317 = vld [vmem:[%s306 + $0x18] sm:$0xff]
        %v318 = vld [vmem:[%s306 + $0x20] sm:$0xff]
        %v319 = vld [vmem:[%s306 + $0x28] sm:$0xff]
        %v320 = vld [vmem:[%s306 + $0x30] sm:$0xff]
        %v321 = vld [vmem:[%s306 + $0x38] sm:$0xff]
        %v322 = vld [vmem:[%s306 + $0x40] sm:$0xff]
        %v323 = vld [vmem:[%s306 + $0x48] sm:$0xff]
        %v324 = vld [vmem:[%s306 + $0x50] sm:$0xff]
        %v325 = vld [vmem:[%s306 + $0x58] sm:$0xff]
        %v326 = vld [vmem:[%s306 + $0x60] sm:$0xff]
        %v327 = vld [vmem:[%s306 + $0x68] sm:$0xff]
        %v328 = vld [vmem:[%s306 + $0x70] sm:$0xff]
        %v329 = vld [vmem:[%s306 + $0x78] sm:$0xff]
        %v330 = vld [vmem:[#allocation3] sm:$0xff]
        %v331 = vld [vmem:[#allocation3 + $0x8] sm:$0xff]
        %v332 = vld [vmem:[#allocation3 + $0x10] sm:$0xff]
        %v333 = vld [vmem:[#allocation3 + $0x18] sm:$0xff]
        %v334 = vld [vmem:[#allocation3 + $0x20] sm:$0xff]
        %v335 = vld [vmem:[#allocation3 + $0x28] sm:$0xff]
        %v336 = vld [vmem:[#allocation3 + $0x30] sm:$0xff]
        %v337 = vld [vmem:[#allocation3 + $0x38] sm:$0xff]
        %v338 = vld [vmem:[#allocation3 + $0x40] sm:$0xff]
        %v339 = vld [vmem:[#allocation3 + $0x48] sm:$0xff]
        %v340 = vld [vmem:[#allocation3 + $0x50] sm:$0xff]
        %v341 = vld [vmem:[#allocation3 + $0x58] sm:$0xff]
        %v342 = vld [vmem:[#allocation3 + $0x60] sm:$0xff]
        %v343 = vld [vmem:[#allocation3 + $0x68] sm:$0xff]
        %v344 = vld [vmem:[#allocation3 + $0x70] sm:$0xff]
        %v345 = vld [vmem:[#allocation3 + $0x78] sm:$0xff]
        %v346 = vld [vmem:[#allocation3 + $0x80] sm:$0xff]
        %v347 = vld [vmem:[#allocation3 + $0x88] sm:$0xff]
        %v348 = vld [vmem:[#allocation3 + $0x90] sm:$0xff]
        %v349 = vld [vmem:[#allocation3 + $0x98] sm:$0xff]
        %v350 = vld [vmem:[#allocation3 + $0xa0] sm:$0xff]
        %v351 = vld [vmem:[#allocation3 + $0xa8] sm:$0xff]
        %v352 = vld [vmem:[#allocation3 + $0xb0] sm:$0xff]
        %v353 = vld [vmem:[#allocation3 + $0xb8] sm:$0xff]
        %v354 = vld [vmem:[#allocation3 + $0xc0] sm:$0xff]
        %v355 = vld [vmem:[#allocation3 + $0xc8] sm:$0xff]
        %v356 = vld [vmem:[#allocation3 + $0xd0] sm:$0xff]
        %v357 = vld [vmem:[#allocation3 + $0xd8] sm:$0xff]
        %v358 = vld [vmem:[#allocation3 + $0xe0] sm:$0xff]
        %v359 = vld [vmem:[#allocation3 + $0xe8] sm:$0xff]
        %v360 = vld [vmem:[#allocation3 + $0xf0] sm:$0xff]
        %v361 = vld [vmem:[#allocation3 + $0xf8] sm:$0xff]
        %v362 = vld [vmem:[#allocation3 + $0x100] sm:$0xff]
        %v363 = vld [vmem:[#allocation3 + $0x108] sm:$0xff]
        %v364 = vld [vmem:[#allocation3 + $0x110] sm:$0xff]
        %v365 = vld [vmem:[#allocation3 + $0x118] sm:$0xff]
        %v366 = vld [vmem:[#allocation3 + $0x120] sm:$0xff]
        %v367 = vld [vmem:[#allocation3 + $0x128] sm:$0xff]
        %v368 = vld [vmem:[#allocation3 + $0x130] sm:$0xff]
        %v369 = vld [vmem:[#allocation3 + $0x138] sm:$0xff]
        %v370 = vld [vmem:[#allocation3 + $0x140] sm:$0xff]
        %v371 = vld [vmem:[#allocation3 + $0x148] sm:$0xff]
        %v372 = vld [vmem:[#allocation3 + $0x150] sm:$0xff]
        %v373 = vld [vmem:[#allocation3 + $0x158] sm:$0xff]
        %v374 = vld [vmem:[#allocation3 + $0x160] sm:$0xff]
        %v375 = vld [vmem:[#allocation3 + $0x168] sm:$0xff]
        %v376 = vld [vmem:[#allocation3 + $0x170] sm:$0xff]
        %v377 = vld [vmem:[#allocation3 + $0x178] sm:$0xff]
        %v378 = vld [vmem:[#allocation3 + $0x180] sm:$0xff]
        %v379 = vld [vmem:[#allocation3 + $0x188] sm:$0xff]
        %v380 = vld [vmem:[#allocation3 + $0x190] sm:$0xff]
        %v381 = vld [vmem:[#allocation3 + $0x198] sm:$0xff]
        %v382 = vld [vmem:[#allocation3 + $0x1a0] sm:$0xff]
        %v383 = vld [vmem:[#allocation3 + $0x1a8] sm:$0xff]
        %v384 = vld [vmem:[#allocation3 + $0x1b0] sm:$0xff]
        %v385 = vld [vmem:[#allocation3 + $0x1b8] sm:$0xff]
        %v386 = vld [vmem:[#allocation3 + $0x1c0] sm:$0xff]
        %v387 = vld [vmem:[#allocation3 + $0x1c8] sm:$0xff]
        %v388 = vld [vmem:[#allocation3 + $0x1d0] sm:$0xff]
        %v389 = vld [vmem:[#allocation3 + $0x1d8] sm:$0xff]
        %v390 = vld [vmem:[#allocation3 + $0x1e0] sm:$0xff]
        %v391 = vld [vmem:[#allocation3 + $0x1e8] sm:$0xff]
        %v392 = vld [vmem:[#allocation3 + $0x1f0] sm:$0xff]
        %v393 = vld [vmem:[#allocation3 + $0x1f8] sm:$0xff]
        %v394 = vld [vmem:[%s2] sm:$0xf]
        %v396 = vlaneseq
        %v397 = vshrl.u32 %v396, 7
        %v398 = vsub.s32 0, %v397
        %v399 = vrot.slane %v394, %v398
        %v400 = vlaneseq
        %v401 = vshrl.u32 %v400, 7
        %v402 = vsub.s32 1, %v401
        %v403 = vrot.slane %v394, %v402
        %v404 = vlaneseq
        %v405 = vshrl.u32 %v404, 7
        %v406 = vsub.s32 2, %v405
        %v407 = vrot.slane %v394, %v406
        %v408 = vlaneseq
        %v409 = vshrl.u32 %v408, 7
        %v410 = vsub.s32 3, %v409
        %v411 = vrot.slane %v394, %v410
        %416 = vmatprep.subr.mxu0 %v331
        %417 = vmatpush1.msra.mxu0 %v330
        %418 = vmatprep.subr.mxu0 %v335
        %419 = vmatpush1.msra.mxu0 %v334
        %420 = vmatprep.subr.mxu0 %v339
        %421 = vmatpush1.msra.mxu0 %v338
        %422 = vmatprep.subr.mxu0 %v343
        %423 = vmatpush1.msra.mxu0 %v342
        %424 = vmatprep.subr.mxu0 %v347
        %425 = vmatpush1.msra.mxu0 %v346
        %426 = vmatprep.subr.mxu0 %v351
        %427 = vmatpush1.msra.mxu0 %v350
        %428 = vmatprep.subr.mxu0 %v355
        %429 = vmatpush1.msra.mxu0 %v354
        %430 = vmatprep.subr.mxu0 %v359
        %431 = vmatpush1.msra.mxu0 %v358
        %432 = vmatprep.subr.mxu0 %v363
        %433 = vmatpush1.msra.mxu0 %v362
        %434 = vmatprep.subr.mxu0 %v367
        %435 = vmatpush1.msra.mxu0 %v366
        %436 = vmatprep.subr.mxu0 %v371
        %437 = vmatpush1.msra.mxu0 %v370
        %438 = vmatprep.subr.mxu0 %v375
        %439 = vmatpush1.msra.mxu0 %v374
        %440 = vmatprep.subr.mxu0 %v379
        %441 = vmatpush1.msra.mxu0 %v378
        %442 = vmatprep.subr.mxu0 %v383
        %443 = vmatpush1.msra.mxu0 %v382
        %444 = vmatprep.subr.mxu0 %v387
        %445 = vmatpush1.msra.mxu0 %v386
        %446 = vmatprep.subr.mxu0 %v391
        %447 = vmatpush1.msra.mxu0 %v390
        %448 = vmatprep.subr.mxu0 0.0
        %449 = vmatpush1.msra.mxu0 0.0
        %450 = vmatprep.subr.mxu0 0.0
        %451 = vmatpush1.msra.mxu0 0.0
        %452 = vmatprep.subr.mxu0 0.0
        %453 = vmatpush1.msra.mxu0 0.0
        %454 = vmatprep.subr.mxu0 0.0
        %455 = vmatpush1.msra.mxu0 0.0
        %456 = vmatprep.subr.mxu0 0.0
        %457 = vmatpush1.msra.mxu0 0.0
        %458 = vmatprep.subr.mxu0 0.0
        %459 = vmatpush1.msra.mxu0 0.0
        %460 = vmatprep.subr.mxu0 0.0
        %461 = vmatpush1.msra.mxu0 0.0
        %462 = vmatprep.subr.mxu0 0.0
        %463 = vmatpush1.msra.mxu0 0.0
        %464 = vmatprep.subr.mxu0 0.0
        %465 = vmatpush1.msra.mxu0 0.0
        %466 = vmatprep.subr.mxu0 0.0
        %467 = vmatpush1.msra.mxu0 0.0
        %468 = vmatprep.subr.mxu0 0.0
        %469 = vmatpush1.msra.mxu0 0.0
        %470 = vmatprep.subr.mxu0 0.0
        %471 = vmatpush1.msra.mxu0 0.0
        %472 = vmatprep.subr.mxu0 0.0
        %473 = vmatpush1.msra.mxu0 0.0
        %474 = vmatprep.subr.mxu0 0.0
        %475 = vmatpush1.msra.mxu0 0.0
        %476 = vmatprep.subr.mxu0 0.0
        %477 = vmatpush1.msra.mxu0 0.0
        %478 = vmatprep.subr.mxu0 0.0
        %479 = vmatpush1.msra.mxu0 0.0
        %480 = vmatprep.mubr.f32.mxu0 0.0
        %481 = vmatmul.mubr.f32.gmra.mrb[0].mxu0 %v314
        %v482 = vpop.f32.mrb[0].mxu0
        %v483 = vadd.f32 %v399, %v482
        %v484 = vpop.f32.mrb[0].mxu0
        %v485 = vadd.f32 %v403, %v484
        %486 = vmatprep.mubr.f32.mxu0 0.0
        %487 = vmatmul.mubr.f32.gmra.mrb[0].mxu0 %v315
        %v488 = vpop.f32.mrb[0].mxu0
        %v489 = vadd.f32 %v399, %v488
        %v490 = vpop.f32.mrb[0].mxu0
        %v491 = vadd.f32 %v403, %v490
        %492 = vmatprep.mubr.f32.mxu0 0.0
        %493 = vmatmul.mubr.f32.gmra.mrb[0].mxu0 %v316
        %v494 = vpop.f32.mrb[0].mxu0
        %v495 = vadd.f32 %v399, %v494
        %v496 = vpop.f32.mrb[0].mxu0
        %v497 = vadd.f32 %v403, %v496
        %498 = vmatprep.mubr.f32.mxu0 0.0
        %499 = vmatmul.mubr.f32.gmra.mrb[0].mxu0 %v317
        %v500 = vpop.f32.mrb[0].mxu0
        %v501 = vadd.f32 %v399, %v500
        %v502 = vpop.f32.mrb[0].mxu0
        %v503 = vadd.f32 %v403, %v502
        %504 = vmatprep.mubr.f32.mxu0 0.0
        %505 = vmatmul.mubr.f32.gmra.mrb[0].mxu0 %v318
        %v506 = vpop.f32.mrb[0].mxu0
        %v507 = vadd.f32 %v399, %v506
        %v508 = vpop.f32.mrb[0].mxu0
        %v509 = vadd.f32 %v403, %v508
        %510 = vmatprep.mubr.f32.mxu0 0.0
        %511 = vmatmul.mubr.f32.gmra.mrb[0].mxu0 %v319
        %v512 = vpop.f32.mrb[0].mxu0
        %v513 = vadd.f32 %v399, %v512
        %v514 = vpop.f32.mrb[0].mxu0
        %v515 = vadd.f32 %v403, %v514
        %516 = vmatprep.mubr.f32.mxu0 0.0
        %517 = vmatmul.mubr.f32.gmra.mrb[0].mxu0 %v320
        %v518 = vpop.f32.mrb[0].mxu0
        %v519 = vadd.f32 %v399, %v518
        %v520 = vpop.f32.mrb[0].mxu0
        %v521 = vadd.f32 %v403, %v520
        %522 = vmatprep.mubr.f32.mxu0 0.0
        %523 = vmatmul.mubr.f32.gmra.mrb[0].mxu0 %v321
        %v524 = vpop.f32.mrb[0].mxu0
        %v525 = vadd.f32 %v399, %v524
        %v526 = vpop.f32.mrb[0].mxu0
        %v527 = vadd.f32 %v403, %v526
        %528 = vmatprep.mubr.f32.mxu0 0.0
        %529 = vmatmul.mubr.f32.gmra.mrb[0].mxu0 %v322
        %v530 = vpop.f32.mrb[0].mxu0
        %v531 = vadd.f32 %v399, %v530
        %v532 = vpop.f32.mrb[0].mxu0
        %v533 = vadd.f32 %v403, %v532
        %534 = vmatprep.mubr.f32.mxu0 0.0
        %535 = vmatmul.mubr.f32.gmra.mrb[0].mxu0 %v323
        %v536 = vpop.f32.mrb[0].mxu0
        %v537 = vadd.f32 %v399, %v536
        %v538 = vpop.f32.mrb[0].mxu0
        %v539 = vadd.f32 %v403, %v538
        %540 = vmatprep.mubr.f32.mxu0 0.0
        %541 = vmatmul.mubr.f32.gmra.mrb[0].mxu0 %v324
        %v542 = vpop.f32.mrb[0].mxu0
        %v543 = vadd.f32 %v399, %v542
        %v544 = vpop.f32.mrb[0].mxu0
        %v545 = vadd.f32 %v403, %v544
        %546 = vmatprep.mubr.f32.mxu0 0.0
        %547 = vmatmul.mubr.f32.gmra.mrb[0].mxu0 %v325
        %v548 = vpop.f32.mrb[0].mxu0
        %v549 = vadd.f32 %v399, %v548
        %v550 = vpop.f32.mrb[0].mxu0
        %v551 = vadd.f32 %v403, %v550
        %552 = vmatprep.mubr.f32.mxu0 0.0
        %553 = vmatmul.mubr.f32.gmra.mrb[0].mxu0 %v326
        %v554 = vpop.f32.mrb[0].mxu0
        %v555 = vadd.f32 %v399, %v554
        %v556 = vpop.f32.mrb[0].mxu0
        %v557 = vadd.f32 %v403, %v556
        %558 = vmatprep.mubr.f32.mxu0 0.0
        %559 = vmatmul.mubr.f32.gmra.mrb[0].mxu0 %v327
        %v560 = vpop.f32.mrb[0].mxu0
        %v561 = vadd.f32 %v399, %v560
        %v562 = vpop.f32.mrb[0].mxu0
        %v563 = vadd.f32 %v403, %v562
        %564 = vmatprep.mubr.f32.mxu0 0.0
        %565 = vmatmul.mubr.f32.gmra.mrb[0].mxu0 %v328
        %v566 = vpop.f32.mrb[0].mxu0
        %v567 = vadd.f32 %v399, %v566
        %v568 = vpop.f32.mrb[0].mxu0
        %v569 = vadd.f32 %v403, %v568
        %570 = vmatprep.mubr.f32.mxu0 0.0
        %571 = vmatmul.mubr.f32.gmra.mrb[0].mxu0 %v329
        %v572 = vpop.f32.mrb[0].mxu0
        %v573 = vadd.f32 %v399, %v572
        %v574 = vpop.f32.mrb[0].mxu0
        %v575 = vadd.f32 %v403, %v574
        %576 = vdwg.mxu0
        %577 = vmatprep.subr.mxu0 %v333
        %578 = vmatpush1.msra.mxu0 %v332
        %579 = vmatprep.subr.mxu0 %v337
        %580 = vmatpush1.msra.mxu0 %v336
        %581 = vmatprep.subr.mxu0 %v341
        %582 = vmatpush1.msra.mxu0 %v340
        %583 = vmatprep.subr.mxu0 %v345
        %584 = vmatpush1.msra.mxu0 %v344
        %585 = vmatprep.subr.mxu0 %v349
        %586 = vmatpush1.msra.mxu0 %v348
        %587 = vmatprep.subr.mxu0 %v353
        %588 = vmatpush1.msra.mxu0 %v352
        %589 = vmatprep.subr.mxu0 %v357
        %590 = vmatpush1.msra.mxu0 %v356
        %591 = vmatprep.subr.mxu0 %v361
        %592 = vmatpush1.msra.mxu0 %v360
        %593 = vmatprep.subr.mxu0 %v365
        %594 = vmatpush1.msra.mxu0 %v364
        %595 = vmatprep.subr.mxu0 %v369
        %596 = vmatpush1.msra.mxu0 %v368
        %597 = vmatprep.subr.mxu0 %v373
        %598 = vmatpush1.msra.mxu0 %v372
        %599 = vmatprep.subr.mxu0 %v377
        %600 = vmatpush1.msra.mxu0 %v376
        %601 = vmatprep.subr.mxu0 %v381
        %602 = vmatpush1.msra.mxu0 %v380
        %603 = vmatprep.subr.mxu0 %v385
        %604 = vmatpush1.msra.mxu0 %v384
        %605 = vmatprep.subr.mxu0 %v389
        %606 = vmatpush1.msra.mxu0 %v388
        %607 = vmatprep.subr.mxu0 %v393
        %608 = vmatpush1.msra.mxu0 %v392
        %609 = vmatprep.subr.mxu0 0.0
        %610 = vmatpush1.msra.mxu0 0.0
        %611 = vmatprep.subr.mxu0 0.0
        %612 = vmatpush1.msra.mxu0 0.0
        %613 = vmatprep.subr.mxu0 0.0
        %614 = vmatpush1.msra.mxu0 0.0
        %615 = vmatprep.subr.mxu0 0.0
        %616 = vmatpush1.msra.mxu0 0.0
        %617 = vmatprep.subr.mxu0 0.0
        %618 = vmatpush1.msra.mxu0 0.0
        %619 = vmatprep.subr.mxu0 0.0
        %620 = vmatpush1.msra.mxu0 0.0
        %621 = vmatprep.subr.mxu0 0.0
        %622 = vmatpush1.msra.mxu0 0.0
        %623 = vmatprep.subr.mxu0 0.0
        %624 = vmatpush1.msra.mxu0 0.0
        %625 = vmatprep.subr.mxu0 0.0
        %626 = vmatpush1.msra.mxu0 0.0
        %627 = vmatprep.subr.mxu0 0.0
        %628 = vmatpush1.msra.mxu0 0.0
        %629 = vmatprep.subr.mxu0 0.0
        %630 = vmatpush1.msra.mxu0 0.0
        %631 = vmatprep.subr.mxu0 0.0
        %632 = vmatpush1.msra.mxu0 0.0
        %633 = vmatprep.subr.mxu0 0.0
        %634 = vmatpush1.msra.mxu0 0.0
        %635 = vmatprep.subr.mxu0 0.0
        %636 = vmatpush1.msra.mxu0 0.0
        %637 = vmatprep.subr.mxu0 0.0
        %638 = vmatpush1.msra.mxu0 0.0
        %639 = vmatprep.subr.mxu0 0.0
        %640 = vmatpush1.msra.mxu0 0.0
        %641 = vmatprep.mubr.f32.mxu0 0.0
        %642 = vmatmul.mubr.f32.gmra.mrb[0].mxu0 %v314
        %v643 = vpop.f32.mrb[0].mxu0
        %v644 = vadd.f32 %v407, %v643
        %v645 = vpop.f32.mrb[0].mxu0
        %v646 = vadd.f32 %v411, %v645
        %647 = vmatprep.mubr.f32.mxu0 0.0
        %648 = vmatmul.mubr.f32.gmra.mrb[0].mxu0 %v315
        %v649 = vpop.f32.mrb[0].mxu0
        %v650 = vadd.f32 %v407, %v649
        %v651 = vpop.f32.mrb[0].mxu0
        %v652 = vadd.f32 %v411, %v651
        %653 = vmatprep.mubr.f32.mxu0 0.0
        %654 = vmatmul.mubr.f32.gmra.mrb[0].mxu0 %v316
        %v655 = vpop.f32.mrb[0].mxu0
        %v656 = vadd.f32 %v407, %v655
        %v657 = vpop.f32.mrb[0].mxu0
        %v658 = vadd.f32 %v411, %v657
        %659 = vmatprep.mubr.f32.mxu0 0.0
        %660 = vmatmul.mubr.f32.gmra.mrb[0].mxu0 %v317
        %v661 = vpop.f32.mrb[0].mxu0
        %v662 = vadd.f32 %v407, %v661
        %v663 = vpop.f32.mrb[0].mxu0
        %v664 = vadd.f32 %v411, %v663
        %665 = vmatprep.mubr.f32.mxu0 0.0
        %666 = vmatmul.mubr.f32.gmra.mrb[0].mxu0 %v318
        %v667 = vpop.f32.mrb[0].mxu0
        %v668 = vadd.f32 %v407, %v667
        %v669 = vpop.f32.mrb[0].mxu0
        %v670 = vadd.f32 %v411, %v669
        %671 = vmatprep.mubr.f32.mxu0 0.0
        %672 = vmatmul.mubr.f32.gmra.mrb[0].mxu0 %v319
        %v673 = vpop.f32.mrb[0].mxu0
        %v674 = vadd.f32 %v407, %v673
        %v675 = vpop.f32.mrb[0].mxu0
        %v676 = vadd.f32 %v411, %v675
        %677 = vmatprep.mubr.f32.mxu0 0.0
        %678 = vmatmul.mubr.f32.gmra.mrb[0].mxu0 %v320
        %v679 = vpop.f32.mrb[0].mxu0
        %v680 = vadd.f32 %v407, %v679
        %v681 = vpop.f32.mrb[0].mxu0
        %v682 = vadd.f32 %v411, %v681
        %683 = vmatprep.mubr.f32.mxu0 0.0
        %684 = vmatmul.mubr.f32.gmra.mrb[0].mxu0 %v321
        %v685 = vpop.f32.mrb[0].mxu0
        %v686 = vadd.f32 %v407, %v685
        %v687 = vpop.f32.mrb[0].mxu0
        %v688 = vadd.f32 %v411, %v687
        %689 = vmatprep.mubr.f32.mxu0 0.0
        %690 = vmatmul.mubr.f32.gmra.mrb[0].mxu0 %v322
        %v691 = vpop.f32.mrb[0].mxu0
        %v692 = vadd.f32 %v407, %v691
        %v693 = vpop.f32.mrb[0].mxu0
        %v694 = vadd.f32 %v411, %v693
        %695 = vmatprep.mubr.f32.mxu0 0.0
        %696 = vmatmul.mubr.f32.gmra.mrb[0].mxu0 %v323
        %v697 = vpop.f32.mrb[0].mxu0
        %v698 = vadd.f32 %v407, %v697
        %v699 = vpop.f32.mrb[0].mxu0
        %v700 = vadd.f32 %v411, %v699
        %701 = vmatprep.mubr.f32.mxu0 0.0
        %702 = vmatmul.mubr.f32.gmra.mrb[0].mxu0 %v324
        %v703 = vpop.f32.mrb[0].mxu0
        %v704 = vadd.f32 %v407, %v703
        %v705 = vpop.f32.mrb[0].mxu0
        %v706 = vadd.f32 %v411, %v705
        %707 = vmatprep.mubr.f32.mxu0 0.0
        %708 = vmatmul.mubr.f32.gmra.mrb[0].mxu0 %v325
        %v709 = vpop.f32.mrb[0].mxu0
        %v710 = vadd.f32 %v407, %v709
        %v711 = vpop.f32.mrb[0].mxu0
        %v712 = vadd.f32 %v411, %v711
        %713 = vmatprep.mubr.f32.mxu0 0.0
        %714 = vmatmul.mubr.f32.gmra.mrb[0].mxu0 %v326
        %v715 = vpop.f32.mrb[0].mxu0
        %v716 = vadd.f32 %v407, %v715
        %v717 = vpop.f32.mrb[0].mxu0
        %v718 = vadd.f32 %v411, %v717
        %719 = vmatprep.mubr.f32.mxu0 0.0
        %720 = vmatmul.mubr.f32.gmra.mrb[0].mxu0 %v327
        %v721 = vpop.f32.mrb[0].mxu0
        %v722 = vadd.f32 %v407, %v721
        %v723 = vpop.f32.mrb[0].mxu0
        %v724 = vadd.f32 %v411, %v723
        %725 = vmatprep.mubr.f32.mxu0 0.0
        %726 = vmatmul.mubr.f32.gmra.mrb[0].mxu0 %v328
        %v727 = vpop.f32.mrb[0].mxu0
        %v728 = vadd.f32 %v407, %v727
        %v729 = vpop.f32.mrb[0].mxu0
        %v730 = vadd.f32 %v411, %v729
        %731 = vmatprep.mubr.f32.mxu0 0.0
        %732 = vmatmul.mubr.f32.gmra.mrb[0].mxu0 %v329
        %v733 = vpop.f32.mrb[0].mxu0
        %v734 = vadd.f32 %v407, %v733
        %v735 = vpop.f32.mrb[0].mxu0
        %v736 = vadd.f32 %v411, %v735
        %737 = vdwg.mxu0
        %v738 = vmax.f32 %v483, 0.0
        %v739 = vmax.f32 %v485, 0.0
        %v740 = vmax.f32 %v644, 0.0
        %v741 = vmax.f32 %v646, 0.0
        %v742 = vmax.f32 %v489, 0.0
        %v743 = vmax.f32 %v491, 0.0
        %v744 = vmax.f32 %v650, 0.0
        %v745 = vmax.f32 %v652, 0.0
        %v746 = vmax.f32 %v495, 0.0
        %v747 = vmax.f32 %v497, 0.0
        %v748 = vmax.f32 %v656, 0.0
        %v749 = vmax.f32 %v658, 0.0
        %v750 = vmax.f32 %v501, 0.0
        %v751 = vmax.f32 %v503, 0.0
        %v752 = vmax.f32 %v662, 0.0
        %v753 = vmax.f32 %v664, 0.0
        %v754 = vmax.f32 %v507, 0.0
        %v755 = vmax.f32 %v509, 0.0
        %v756 = vmax.f32 %v668, 0.0
        %v757 = vmax.f32 %v670, 0.0
        %v758 = vmax.f32 %v513, 0.0
        %v759 = vmax.f32 %v515, 0.0
        %v760 = vmax.f32 %v674, 0.0
        %v761 = vmax.f32 %v676, 0.0
        %v762 = vmax.f32 %v519, 0.0
        %v763 = vmax.f32 %v521, 0.0
        %v764 = vmax.f32 %v680, 0.0
        %v765 = vmax.f32 %v682, 0.0
        %v766 = vmax.f32 %v525, 0.0
        %v767 = vmax.f32 %v527, 0.0
        %v768 = vmax.f32 %v686, 0.0
        %v769 = vmax.f32 %v688, 0.0
        %v770 = vmax.f32 %v531, 0.0
        %v771 = vmax.f32 %v533, 0.0
        %v772 = vmax.f32 %v692, 0.0
        %v773 = vmax.f32 %v694, 0.0
        %v774 = vmax.f32 %v537, 0.0
        %v775 = vmax.f32 %v539, 0.0
        %v776 = vmax.f32 %v698, 0.0
        %v777 = vmax.f32 %v700, 0.0
        %v778 = vmax.f32 %v543, 0.0
        %v779 = vmax.f32 %v545, 0.0
        %v780 = vmax.f32 %v704, 0.0
        %v781 = vmax.f32 %v706, 0.0
        %v782 = vmax.f32 %v549, 0.0
        %v783 = vmax.f32 %v551, 0.0
        %v784 = vmax.f32 %v710, 0.0
        %v785 = vmax.f32 %v712, 0.0
        %v786 = vmax.f32 %v555, 0.0
        %v787 = vmax.f32 %v557, 0.0
        %v788 = vmax.f32 %v716, 0.0
        %v789 = vmax.f32 %v718, 0.0
        %v790 = vmax.f32 %v561, 0.0
        %v791 = vmax.f32 %v563, 0.0
        %v792 = vmax.f32 %v722, 0.0
        %v793 = vmax.f32 %v724, 0.0
        %v794 = vmax.f32 %v567, 0.0
        %v795 = vmax.f32 %v569, 0.0
        %v796 = vmax.f32 %v728, 0.0
        %v797 = vmax.f32 %v730, 0.0
        %v798 = vmax.f32 %v573, 0.0
        %v799 = vmax.f32 %v575, 0.0
        %v800 = vmax.f32 %v734, 0.0
        %v801 = vmax.f32 %v736, 0.0
        %v802 = vld [vmem:[#allocation5] sm:$0xff]
        %v803 = vld [vmem:[#allocation5 + $0x8] sm:$0xff]
        %v804 = vld [vmem:[#allocation5 + $0x10] sm:$0xff]
        %v805 = vld [vmem:[#allocation5 + $0x18] sm:$0xff]
        %v806 = vld [vmem:[#allocation5 + $0x20] sm:$0xff]
        %v807 = vld [vmem:[#allocation5 + $0x28] sm:$0xff]
        %v808 = vld [vmem:[#allocation5 + $0x30] sm:$0xff]
        %v809 = vld [vmem:[#allocation5 + $0x38] sm:$0xff]
        %v810 = vld [vmem:[#allocation5 + $0x40] sm:$0xff]
        %v811 = vld [vmem:[#allocation5 + $0x48] sm:$0xff]
        %v812 = vld [vmem:[#allocation5 + $0x50] sm:$0xff]
        %v813 = vld [vmem:[#allocation5 + $0x58] sm:$0xff]
        %v814 = vld [vmem:[#allocation5 + $0x60] sm:$0xff]
        %v815 = vld [vmem:[#allocation5 + $0x68] sm:$0xff]
        %v816 = vld [vmem:[#allocation5 + $0x70] sm:$0xff]
        %v817 = vld [vmem:[#allocation5 + $0x78] sm:$0xff]
        %v818 = vld [vmem:[#allocation5 + $0x80] sm:$0xff]
        %v819 = vld [vmem:[#allocation5 + $0x88] sm:$0xff]
        %v820 = vld [vmem:[#allocation5 + $0x90] sm:$0xff]
        %v821 = vld [vmem:[#allocation5 + $0x98] sm:$0xff]
        %v822 = vld [vmem:[#allocation5 + $0xa0] sm:$0xff]
        %v823 = vld [vmem:[#allocation5 + $0xa8] sm:$0xff]
        %v824 = vld [vmem:[#allocation5 + $0xb0] sm:$0xff]
        %v825 = vld [vmem:[#allocation5 + $0xb8] sm:$0xff]
        %v826 = vld [vmem:[#allocation5 + $0xc0] sm:$0xff]
        %v827 = vld [vmem:[#allocation5 + $0xc8] sm:$0xff]
        %v828 = vld [vmem:[#allocation5 + $0xd0] sm:$0xff]
        %v829 = vld [vmem:[#allocation5 + $0xd8] sm:$0xff]
        %v830 = vld [vmem:[#allocation5 + $0xe0] sm:$0xff]
        %v831 = vld [vmem:[#allocation5 + $0xe8] sm:$0xff]
        %v832 = vld [vmem:[#allocation5 + $0xf0] sm:$0xff]
        %v833 = vld [vmem:[#allocation5 + $0xf8] sm:$0xff]
        %v834 = vld [vmem:[#allocation5 + $0x100] sm:$0xff]
        %v835 = vld [vmem:[#allocation5 + $0x108] sm:$0xff]
        %v836 = vld [vmem:[#allocation5 + $0x110] sm:$0xff]
        %v837 = vld [vmem:[#allocation5 + $0x118] sm:$0xff]
        %v838 = vld [vmem:[#allocation5 + $0x120] sm:$0xff]
        %v839 = vld [vmem:[#allocation5 + $0x128] sm:$0xff]
        %v840 = vld [vmem:[#allocation5 + $0x130] sm:$0xff]
        %v841 = vld [vmem:[#allocation5 + $0x138] sm:$0xff]
        %v842 = vld [vmem:[#allocation5 + $0x140] sm:$0xff]
        %v843 = vld [vmem:[#allocation5 + $0x148] sm:$0xff]
        %v844 = vld [vmem:[#allocation5 + $0x150] sm:$0xff]
        %v845 = vld [vmem:[#allocation5 + $0x158] sm:$0xff]
        %v846 = vld [vmem:[#allocation5 + $0x160] sm:$0xff]
        %v847 = vld [vmem:[#allocation5 + $0x168] sm:$0xff]
        %v848 = vld [vmem:[#allocation5 + $0x170] sm:$0xff]
        %v849 = vld [vmem:[#allocation5 + $0x178] sm:$0xff]
        %v850 = vld [vmem:[#allocation5 + $0x180] sm:$0xff]
        %v851 = vld [vmem:[#allocation5 + $0x188] sm:$0xff]
        %v852 = vld [vmem:[#allocation5 + $0x190] sm:$0xff]
        %v853 = vld [vmem:[#allocation5 + $0x198] sm:$0xff]
        %v854 = vld [vmem:[#allocation5 + $0x1a0] sm:$0xff]
        %v855 = vld [vmem:[#allocation5 + $0x1a8] sm:$0xff]
        %v856 = vld [vmem:[#allocation5 + $0x1b0] sm:$0xff]
        %v857 = vld [vmem:[#allocation5 + $0x1b8] sm:$0xff]
        %v858 = vld [vmem:[#allocation5 + $0x1c0] sm:$0xff]
        %v859 = vld [vmem:[#allocation5 + $0x1c8] sm:$0xff]
        %v860 = vld [vmem:[#allocation5 + $0x1d0] sm:$0xff]
        %v861 = vld [vmem:[#allocation5 + $0x1d8] sm:$0xff]
        %v862 = vld [vmem:[#allocation5 + $0x1e0] sm:$0xff]
        %v863 = vld [vmem:[#allocation5 + $0x1e8] sm:$0xff]
        %v864 = vld [vmem:[#allocation5 + $0x1f0] sm:$0xff]
        %v865 = vld [vmem:[#allocation5 + $0x1f8] sm:$0xff]
        %v866 = vld [vmem:[#allocation5 + $0x200] sm:$0xff]
        %v867 = vld [vmem:[#allocation5 + $0x208] sm:$0xff]
        %v868 = vld [vmem:[#allocation5 + $0x210] sm:$0xff]
        %v869 = vld [vmem:[#allocation5 + $0x218] sm:$0xff]
        %v870 = vld [vmem:[#allocation5 + $0x220] sm:$0xff]
        %v871 = vld [vmem:[#allocation5 + $0x228] sm:$0xff]
        %v872 = vld [vmem:[#allocation5 + $0x230] sm:$0xff]
        %v873 = vld [vmem:[#allocation5 + $0x238] sm:$0xff]
        %v874 = vld [vmem:[#allocation5 + $0x240] sm:$0xff]
        %v875 = vld [vmem:[#allocation5 + $0x248] sm:$0xff]
        %v876 = vld [vmem:[#allocation5 + $0x250] sm:$0xff]
        %v877 = vld [vmem:[#allocation5 + $0x258] sm:$0xff]
        %v878 = vld [vmem:[#allocation5 + $0x260] sm:$0xff]
        %v879 = vld [vmem:[#allocation5 + $0x268] sm:$0xff]
        %v880 = vld [vmem:[#allocation5 + $0x270] sm:$0xff]
        %v881 = vld [vmem:[#allocation5 + $0x278] sm:$0xff]
        %v882 = vld [vmem:[#allocation5 + $0x280] sm:$0xff]
        %v883 = vld [vmem:[#allocation5 + $0x288] sm:$0xff]
        %v884 = vld [vmem:[#allocation5 + $0x290] sm:$0xff]
        %v885 = vld [vmem:[#allocation5 + $0x298] sm:$0xff]
        %v886 = vld [vmem:[#allocation5 + $0x2a0] sm:$0xff]
        %v887 = vld [vmem:[#allocation5 + $0x2a8] sm:$0xff]
        %v888 = vld [vmem:[#allocation5 + $0x2b0] sm:$0xff]
        %v889 = vld [vmem:[#allocation5 + $0x2b8] sm:$0xff]
        %v890 = vld [vmem:[#allocation5 + $0x2c0] sm:$0xff]
        %v891 = vld [vmem:[#allocation5 + $0x2c8] sm:$0xff]
        %v892 = vld [vmem:[#allocation5 + $0x2d0] sm:$0xff]
        %v893 = vld [vmem:[#allocation5 + $0x2d8] sm:$0xff]
        %v894 = vld [vmem:[#allocation5 + $0x2e0] sm:$0xff]
        %v895 = vld [vmem:[#allocation5 + $0x2e8] sm:$0xff]
        %v896 = vld [vmem:[#allocation5 + $0x2f0] sm:$0xff]
        %v897 = vld [vmem:[#allocation5 + $0x2f8] sm:$0xff]
        %v898 = vld [vmem:[#allocation5 + $0x300] sm:$0xff]
        %v899 = vld [vmem:[#allocation5 + $0x308] sm:$0xff]
        %v900 = vld [vmem:[#allocation5 + $0x310] sm:$0xff]
        %v901 = vld [vmem:[#allocation5 + $0x318] sm:$0xff]
        %v902 = vld [vmem:[#allocation5 + $0x320] sm:$0xff]
        %v903 = vld [vmem:[#allocation5 + $0x328] sm:$0xff]
        %v904 = vld [vmem:[#allocation5 + $0x330] sm:$0xff]
        %v905 = vld [vmem:[#allocation5 + $0x338] sm:$0xff]
        %v906 = vld [vmem:[#allocation5 + $0x340] sm:$0xff]
        %v907 = vld [vmem:[#allocation5 + $0x348] sm:$0xff]
        %v908 = vld [vmem:[#allocation5 + $0x350] sm:$0xff]
        %v909 = vld [vmem:[#allocation5 + $0x358] sm:$0xff]
        %v910 = vld [vmem:[#allocation5 + $0x360] sm:$0xff]
        %v911 = vld [vmem:[#allocation5 + $0x368] sm:$0xff]
        %v912 = vld [vmem:[#allocation5 + $0x370] sm:$0xff]
        %v913 = vld [vmem:[#allocation5 + $0x378] sm:$0xff]
        %v914 = vld [vmem:[#allocation5 + $0x380] sm:$0xff]
        %v915 = vld [vmem:[#allocation5 + $0x388] sm:$0xff]
        %v916 = vld [vmem:[#allocation5 + $0x390] sm:$0xff]
        %v917 = vld [vmem:[#allocation5 + $0x398] sm:$0xff]
        %v918 = vld [vmem:[#allocation5 + $0x3a0] sm:$0xff]
        %v919 = vld [vmem:[#allocation5 + $0x3a8] sm:$0xff]
        %v920 = vld [vmem:[#allocation5 + $0x3b0] sm:$0xff]
        %v921 = vld [vmem:[#allocation5 + $0x3b8] sm:$0xff]
        %v922 = vld [vmem:[#allocation5 + $0x3c0] sm:$0xff]
        %v923 = vld [vmem:[#allocation5 + $0x3c8] sm:$0xff]
        %v924 = vld [vmem:[#allocation5 + $0x3d0] sm:$0xff]
        %v925 = vld [vmem:[#allocation5 + $0x3d8] sm:$0xff]
        %v926 = vld [vmem:[#allocation5 + $0x3e0] sm:$0xff]
        %v927 = vld [vmem:[#allocation5 + $0x3e8] sm:$0xff]
        %v928 = vld [vmem:[#allocation5 + $0x3f0] sm:$0xff]
        %v929 = vld [vmem:[#allocation5 + $0x3f8] sm:$0xff]
        %v930 = vld [vmem:[#allocation5 + $0x400] sm:$0xff]
        %v931 = vld [vmem:[#allocation5 + $0x408] sm:$0xff]
        %v932 = vld [vmem:[#allocation5 + $0x410] sm:$0xff]
        %v933 = vld [vmem:[#allocation5 + $0x418] sm:$0xff]
        %v934 = vld [vmem:[#allocation5 + $0x420] sm:$0xff]
        %v935 = vld [vmem:[#allocation5 + $0x428] sm:$0xff]
        %v936 = vld [vmem:[#allocation5 + $0x430] sm:$0xff]
        %v937 = vld [vmem:[#allocation5 + $0x438] sm:$0xff]
        %v938 = vld [vmem:[#allocation5 + $0x440] sm:$0xff]
        %v939 = vld [vmem:[#allocation5 + $0x448] sm:$0xff]
        %v940 = vld [vmem:[#allocation5 + $0x450] sm:$0xff]
        %v941 = vld [vmem:[#allocation5 + $0x458] sm:$0xff]
        %v942 = vld [vmem:[#allocation5 + $0x460] sm:$0xff]
        %v943 = vld [vmem:[#allocation5 + $0x468] sm:$0xff]
        %v944 = vld [vmem:[#allocation5 + $0x470] sm:$0xff]
        %v945 = vld [vmem:[#allocation5 + $0x478] sm:$0xff]
        %v946 = vld [vmem:[#allocation5 + $0x480] sm:$0xff]
        %v947 = vld [vmem:[#allocation5 + $0x488] sm:$0xff]
        %v948 = vld [vmem:[#allocation5 + $0x490] sm:$0xff]
        %v949 = vld [vmem:[#allocation5 + $0x498] sm:$0xff]
        %v950 = vld [vmem:[#allocation5 + $0x4a0] sm:$0xff]
        %v951 = vld [vmem:[#allocation5 + $0x4a8] sm:$0xff]
        %v952 = vld [vmem:[#allocation5 + $0x4b0] sm:$0xff]
        %v953 = vld [vmem:[#allocation5 + $0x4b8] sm:$0xff]
        %v954 = vld [vmem:[#allocation5 + $0x4c0] sm:$0xff]
        %v955 = vld [vmem:[#allocation5 + $0x4c8] sm:$0xff]
        %v956 = vld [vmem:[#allocation5 + $0x4d0] sm:$0xff]
        %v957 = vld [vmem:[#allocation5 + $0x4d8] sm:$0xff]
        %v958 = vld [vmem:[#allocation5 + $0x4e0] sm:$0xff]
        %v959 = vld [vmem:[#allocation5 + $0x4e8] sm:$0xff]
        %v960 = vld [vmem:[#allocation5 + $0x4f0] sm:$0xff]
        %v961 = vld [vmem:[#allocation5 + $0x4f8] sm:$0xff]
        %v962 = vld [vmem:[#allocation5 + $0x500] sm:$0xff]
        %v963 = vld [vmem:[#allocation5 + $0x508] sm:$0xff]
        %v964 = vld [vmem:[#allocation5 + $0x510] sm:$0xff]
        %v965 = vld [vmem:[#allocation5 + $0x518] sm:$0xff]
        %v966 = vld [vmem:[#allocation5 + $0x520] sm:$0xff]
        %v967 = vld [vmem:[#allocation5 + $0x528] sm:$0xff]
        %v968 = vld [vmem:[#allocation5 + $0x530] sm:$0xff]
        %v969 = vld [vmem:[#allocation5 + $0x538] sm:$0xff]
        %v970 = vld [vmem:[#allocation5 + $0x540] sm:$0xff]
        %v971 = vld [vmem:[#allocation5 + $0x548] sm:$0xff]
        %v972 = vld [vmem:[#allocation5 + $0x550] sm:$0xff]
        %v973 = vld [vmem:[#allocation5 + $0x558] sm:$0xff]
        %v974 = vld [vmem:[#allocation5 + $0x560] sm:$0xff]
        %v975 = vld [vmem:[#allocation5 + $0x568] sm:$0xff]
        %v976 = vld [vmem:[#allocation5 + $0x570] sm:$0xff]
        %v977 = vld [vmem:[#allocation5 + $0x578] sm:$0xff]
        %v978 = vld [vmem:[#allocation5 + $0x580] sm:$0xff]
        %v979 = vld [vmem:[#allocation5 + $0x588] sm:$0xff]
        %v980 = vld [vmem:[#allocation5 + $0x590] sm:$0xff]
        %v981 = vld [vmem:[#allocation5 + $0x598] sm:$0xff]
        %v982 = vld [vmem:[#allocation5 + $0x5a0] sm:$0xff]
        %v983 = vld [vmem:[#allocation5 + $0x5a8] sm:$0xff]
        %v984 = vld [vmem:[#allocation5 + $0x5b0] sm:$0xff]
        %v985 = vld [vmem:[#allocation5 + $0x5b8] sm:$0xff]
        %v986 = vld [vmem:[#allocation5 + $0x5c0] sm:$0xff]
        %v987 = vld [vmem:[#allocation5 + $0x5c8] sm:$0xff]
        %v988 = vld [vmem:[#allocation5 + $0x5d0] sm:$0xff]
        %v989 = vld [vmem:[#allocation5 + $0x5d8] sm:$0xff]
        %v990 = vld [vmem:[#allocation5 + $0x5e0] sm:$0xff]
        %v991 = vld [vmem:[#allocation5 + $0x5e8] sm:$0xff]
        %v992 = vld [vmem:[#allocation5 + $0x5f0] sm:$0xff]
        %v993 = vld [vmem:[#allocation5 + $0x5f8] sm:$0xff]
        %v994 = vld [vmem:[#allocation5 + $0x600] sm:$0xff]
        %v995 = vld [vmem:[#allocation5 + $0x608] sm:$0xff]
        %v996 = vld [vmem:[#allocation5 + $0x610] sm:$0xff]
        %v997 = vld [vmem:[#allocation5 + $0x618] sm:$0xff]
        %v998 = vld [vmem:[#allocation5 + $0x620] sm:$0xff]
        %v999 = vld [vmem:[#allocation5 + $0x628] sm:$0xff]
        %v1000 = vld [vmem:[#allocation5 + $0x630] sm:$0xff]
        %v1001 = vld [vmem:[#allocation5 + $0x638] sm:$0xff]
        %v1002 = vld [vmem:[#allocation5 + $0x640] sm:$0xff]
        %v1003 = vld [vmem:[#allocation5 + $0x648] sm:$0xff]
        %v1004 = vld [vmem:[#allocation5 + $0x650] sm:$0xff]
        %v1005 = vld [vmem:[#allocation5 + $0x658] sm:$0xff]
        %v1006 = vld [vmem:[#allocation5 + $0x660] sm:$0xff]
        %v1007 = vld [vmem:[#allocation5 + $0x668] sm:$0xff]
        %v1008 = vld [vmem:[#allocation5 + $0x670] sm:$0xff]
        %v1009 = vld [vmem:[#allocation5 + $0x678] sm:$0xff]
        %v1010 = vld [vmem:[#allocation5 + $0x680] sm:$0xff]
        %v1011 = vld [vmem:[#allocation5 + $0x688] sm:$0xff]
        %v1012 = vld [vmem:[#allocation5 + $0x690] sm:$0xff]
        %v1013 = vld [vmem:[#allocation5 + $0x698] sm:$0xff]
        %v1014 = vld [vmem:[#allocation5 + $0x6a0] sm:$0xff]
        %v1015 = vld [vmem:[#allocation5 + $0x6a8] sm:$0xff]
        %v1016 = vld [vmem:[#allocation5 + $0x6b0] sm:$0xff]
        %v1017 = vld [vmem:[#allocation5 + $0x6b8] sm:$0xff]
        %v1018 = vld [vmem:[#allocation5 + $0x6c0] sm:$0xff]
        %v1019 = vld [vmem:[#allocation5 + $0x6c8] sm:$0xff]
        %v1020 = vld [vmem:[#allocation5 + $0x6d0] sm:$0xff]
        %v1021 = vld [vmem:[#allocation5 + $0x6d8] sm:$0xff]
        %v1022 = vld [vmem:[#allocation5 + $0x6e0] sm:$0xff]
        %v1023 = vld [vmem:[#allocation5 + $0x6e8] sm:$0xff]
        %v1024 = vld [vmem:[#allocation5 + $0x6f0] sm:$0xff]
        %v1025 = vld [vmem:[#allocation5 + $0x6f8] sm:$0xff]
        %v1026 = vld [vmem:[#allocation5 + $0x700] sm:$0xff]
        %v1027 = vld [vmem:[#allocation5 + $0x708] sm:$0xff]
        %v1028 = vld [vmem:[#allocation5 + $0x710] sm:$0xff]
        %v1029 = vld [vmem:[#allocation5 + $0x718] sm:$0xff]
        %v1030 = vld [vmem:[#allocation5 + $0x720] sm:$0xff]
        %v1031 = vld [vmem:[#allocation5 + $0x728] sm:$0xff]
        %v1032 = vld [vmem:[#allocation5 + $0x730] sm:$0xff]
        %v1033 = vld [vmem:[#allocation5 + $0x738] sm:$0xff]
        %v1034 = vld [vmem:[#allocation5 + $0x740] sm:$0xff]
        %v1035 = vld [vmem:[#allocation5 + $0x748] sm:$0xff]
        %v1036 = vld [vmem:[#allocation5 + $0x750] sm:$0xff]
        %v1037 = vld [vmem:[#allocation5 + $0x758] sm:$0xff]
        %v1038 = vld [vmem:[#allocation5 + $0x760] sm:$0xff]
        %v1039 = vld [vmem:[#allocation5 + $0x768] sm:$0xff]
        %v1040 = vld [vmem:[#allocation5 + $0x770] sm:$0xff]
        %v1041 = vld [vmem:[#allocation5 + $0x778] sm:$0xff]
        %v1042 = vld [vmem:[#allocation5 + $0x780] sm:$0xff]
        %v1043 = vld [vmem:[#allocation5 + $0x788] sm:$0xff]
        %v1044 = vld [vmem:[#allocation5 + $0x790] sm:$0xff]
        %v1045 = vld [vmem:[#allocation5 + $0x798] sm:$0xff]
        %v1046 = vld [vmem:[#allocation5 + $0x7a0] sm:$0xff]
        %v1047 = vld [vmem:[#allocation5 + $0x7a8] sm:$0xff]
        %v1048 = vld [vmem:[#allocation5 + $0x7b0] sm:$0xff]
        %v1049 = vld [vmem:[#allocation5 + $0x7b8] sm:$0xff]
        %v1050 = vld [vmem:[#allocation5 + $0x7c0] sm:$0xff]
        %v1051 = vld [vmem:[#allocation5 + $0x7c8] sm:$0xff]
        %v1052 = vld [vmem:[#allocation5 + $0x7d0] sm:$0xff]
        %v1053 = vld [vmem:[#allocation5 + $0x7d8] sm:$0xff]
        %v1054 = vld [vmem:[#allocation5 + $0x7e0] sm:$0xff]
        %v1055 = vld [vmem:[#allocation5 + $0x7e8] sm:$0xff]
        %v1056 = vld [vmem:[#allocation5 + $0x7f0] sm:$0xff]
        %v1057 = vld [vmem:[#allocation5 + $0x7f8] sm:$0xff]
        %v1058 = vld [vmem:[%s4] sm:$0xf]
        %v1060 = vlaneseq
        %v1061 = vshrl.u32 %v1060, 7
        %v1062 = vsub.s32 0, %v1061
        %v1063 = vrot.slane %v1058, %v1062
        %v1064 = vlaneseq
        %v1065 = vshrl.u32 %v1064, 7
        %v1066 = vsub.s32 1, %v1065
        %v1067 = vrot.slane %v1058, %v1066
        %v1068 = vlaneseq
        %v1069 = vshrl.u32 %v1068, 7
        %v1070 = vsub.s32 2, %v1069
        %v1071 = vrot.slane %v1058, %v1070
        %v1072 = vlaneseq
        %v1073 = vshrl.u32 %v1072, 7
        %v1074 = vsub.s32 3, %v1073
        %v1075 = vrot.slane %v1058, %v1074
        %1080 = vmatprep.subr.mxu0 %v803
        %1081 = vmatpush1.msra.mxu0 %v802
        %1082 = vmatprep.subr.mxu0 %v807
        %1083 = vmatpush1.msra.mxu0 %v806
        %1084 = vmatprep.subr.mxu0 %v811
        %1085 = vmatpush1.msra.mxu0 %v810
        %1086 = vmatprep.subr.mxu0 %v815
        %1087 = vmatpush1.msra.mxu0 %v814
        %1088 = vmatprep.subr.mxu0 %v819
        %1089 = vmatpush1.msra.mxu0 %v818
        %1090 = vmatprep.subr.mxu0 %v823
        %1091 = vmatpush1.msra.mxu0 %v822
        %1092 = vmatprep.subr.mxu0 %v827
        %1093 = vmatpush1.msra.mxu0 %v826
        %1094 = vmatprep.subr.mxu0 %v831
        %1095 = vmatpush1.msra.mxu0 %v830
        %1096 = vmatprep.subr.mxu0 %v835
        %1097 = vmatpush1.msra.mxu0 %v834
        %1098 = vmatprep.subr.mxu0 %v839
        %1099 = vmatpush1.msra.mxu0 %v838
        %1100 = vmatprep.subr.mxu0 %v843
        %1101 = vmatpush1.msra.mxu0 %v842
        %1102 = vmatprep.subr.mxu0 %v847
        %1103 = vmatpush1.msra.mxu0 %v846
        %1104 = vmatprep.subr.mxu0 %v851
        %1105 = vmatpush1.msra.mxu0 %v850
        %1106 = vmatprep.subr.mxu0 %v855
        %1107 = vmatpush1.msra.mxu0 %v854
        %1108 = vmatprep.subr.mxu0 %v859
        %1109 = vmatpush1.msra.mxu0 %v858
        %1110 = vmatprep.subr.mxu0 %v863
        %1111 = vmatpush1.msra.mxu0 %v862
        %1112 = vmatprep.subr.mxu0 %v867
        %1113 = vmatpush1.msra.mxu0 %v866
        %1114 = vmatprep.subr.mxu0 %v871
        %1115 = vmatpush1.msra.mxu0 %v870
        %1116 = vmatprep.subr.mxu0 %v875
        %1117 = vmatpush1.msra.mxu0 %v874
        %1118 = vmatprep.subr.mxu0 %v879
        %1119 = vmatpush1.msra.mxu0 %v878
        %1120 = vmatprep.subr.mxu0 %v883
        %1121 = vmatpush1.msra.mxu0 %v882
        %1122 = vmatprep.subr.mxu0 %v887
        %1123 = vmatpush1.msra.mxu0 %v886
        %1124 = vmatprep.subr.mxu0 %v891
        %1125 = vmatpush1.msra.mxu0 %v890
        %1126 = vmatprep.subr.mxu0 %v895
        %1127 = vmatpush1.msra.mxu0 %v894
        %1128 = vmatprep.subr.mxu0 %v899
        %1129 = vmatpush1.msra.mxu0 %v898
        %1130 = vmatprep.subr.mxu0 %v903
        %1131 = vmatpush1.msra.mxu0 %v902
        %1132 = vmatprep.subr.mxu0 %v907
        %1133 = vmatpush1.msra.mxu0 %v906
        %1134 = vmatprep.subr.mxu0 %v911
        %1135 = vmatpush1.msra.mxu0 %v910
        %1136 = vmatprep.subr.mxu0 %v915
        %1137 = vmatpush1.msra.mxu0 %v914
        %1138 = vmatprep.subr.mxu0 %v919
        %1139 = vmatpush1.msra.mxu0 %v918
        %1140 = vmatprep.subr.mxu0 %v923
        %1141 = vmatpush1.msra.mxu0 %v922
        %1142 = vmatprep.subr.mxu0 %v927
        %1143 = vmatpush1.msra.mxu0 %v926
        %1144 = vmatprep.mubr.f32.mxu0 %v739
        %1145 = vmatmul.mubr.f32.gmra.mrb[0].mxu0 %v738
        %v1146 = vpop.f32.mrb[0].mxu0
        %v1147 = vadd.f32 %v1063, %v1146
        %v1148 = vpop.f32.mrb[0].mxu0
        %v1149 = vadd.f32 %v1067, %v1148
        %1150 = vmatprep.mubr.f32.mxu0 %v743
        %1151 = vmatmul.mubr.f32.gmra.mrb[0].mxu0 %v742
        %v1152 = vpop.f32.mrb[0].mxu0
        %v1153 = vadd.f32 %v1063, %v1152
        %v1154 = vpop.f32.mrb[0].mxu0
        %v1155 = vadd.f32 %v1067, %v1154
        %1156 = vmatprep.mubr.f32.mxu0 %v747
        %1157 = vmatmul.mubr.f32.gmra.mrb[0].mxu0 %v746
        %v1158 = vpop.f32.mrb[0].mxu0
        %v1159 = vadd.f32 %v1063, %v1158
        %v1160 = vpop.f32.mrb[0].mxu0
        %v1161 = vadd.f32 %v1067, %v1160
        %1162 = vmatprep.mubr.f32.mxu0 %v751
        %1163 = vmatmul.mubr.f32.gmra.mrb[0].mxu0 %v750
        %v1164 = vpop.f32.mrb[0].mxu0
        %v1165 = vadd.f32 %v1063, %v1164
        %v1166 = vpop.f32.mrb[0].mxu0
        %v1167 = vadd.f32 %v1067, %v1166
        %1168 = vmatprep.mubr.f32.mxu0 %v755
        %1169 = vmatmul.mubr.f32.gmra.mrb[0].mxu0 %v754
        %v1170 = vpop.f32.mrb[0].mxu0
        %v1171 = vadd.f32 %v1063, %v1170
        %v1172 = vpop.f32.mrb[0].mxu0
        %v1173 = vadd.f32 %v1067, %v1172
        %1174 = vmatprep.mubr.f32.mxu0 %v759
        %1175 = vmatmul.mubr.f32.gmra.mrb[0].mxu0 %v758
        %v1176 = vpop.f32.mrb[0].mxu0
        %v1177 = vadd.f32 %v1063, %v1176
        %v1178 = vpop.f32.mrb[0].mxu0
        %v1179 = vadd.f32 %v1067, %v1178
        %1180 = vmatprep.mubr.f32.mxu0 %v763
        %1181 = vmatmul.mubr.f32.gmra.mrb[0].mxu0 %v762
        %v1182 = vpop.f32.mrb[0].mxu0
        %v1183 = vadd.f32 %v1063, %v1182
        %v1184 = vpop.f32.mrb[0].mxu0
        %v1185 = vadd.f32 %v1067, %v1184
        %1186 = vmatprep.mubr.f32.mxu0 %v767
        %1187 = vmatmul.mubr.f32.gmra.mrb[0].mxu0 %v766
        %v1188 = vpop.f32.mrb[0].mxu0
        %v1189 = vadd.f32 %v1063, %v1188
        %v1190 = vpop.f32.mrb[0].mxu0
        %v1191 = vadd.f32 %v1067, %v1190
        %1192 = vmatprep.mubr.f32.mxu0 %v771
        %1193 = vmatmul.mubr.f32.gmra.mrb[0].mxu0 %v770
        %v1194 = vpop.f32.mrb[0].mxu0
        %v1195 = vadd.f32 %v1063, %v1194
        %v1196 = vpop.f32.mrb[0].mxu0
        %v1197 = vadd.f32 %v1067, %v1196
        %1198 = vmatprep.mubr.f32.mxu0 %v775
        %1199 = vmatmul.mubr.f32.gmra.mrb[0].mxu0 %v774
        %v1200 = vpop.f32.mrb[0].mxu0
        %v1201 = vadd.f32 %v1063, %v1200
        %v1202 = vpop.f32.mrb[0].mxu0
        %v1203 = vadd.f32 %v1067, %v1202
        %1204 = vmatprep.mubr.f32.mxu0 %v779
        %1205 = vmatmul.mubr.f32.gmra.mrb[0].mxu0 %v778
        %v1206 = vpop.f32.mrb[0].mxu0
        %v1207 = vadd.f32 %v1063, %v1206
        %v1208 = vpop.f32.mrb[0].mxu0
        %v1209 = vadd.f32 %v1067, %v1208
        %1210 = vmatprep.mubr.f32.mxu0 %v783
        %1211 = vmatmul.mubr.f32.gmra.mrb[0].mxu0 %v782
        %v1212 = vpop.f32.mrb[0].mxu0
        %v1213 = vadd.f32 %v1063, %v1212
        %v1214 = vpop.f32.mrb[0].mxu0
        %v1215 = vadd.f32 %v1067, %v1214
        %1216 = vmatprep.mubr.f32.mxu0 %v787
        %1217 = vmatmul.mubr.f32.gmra.mrb[0].mxu0 %v786
        %v1218 = vpop.f32.mrb[0].mxu0
        %v1219 = vadd.f32 %v1063, %v1218
        %v1220 = vpop.f32.mrb[0].mxu0
        %v1221 = vadd.f32 %v1067, %v1220
        %1222 = vmatprep.mubr.f32.mxu0 %v791
        %1223 = vmatmul.mubr.f32.gmra.mrb[0].mxu0 %v790
        %v1224 = vpop.f32.mrb[0].mxu0
        %v1225 = vadd.f32 %v1063, %v1224
        %v1226 = vpop.f32.mrb[0].mxu0
        %v1227 = vadd.f32 %v1067, %v1226
        %1228 = vmatprep.mubr.f32.mxu0 %v795
        %1229 = vmatmul.mubr.f32.gmra.mrb[0].mxu0 %v794
        %v1230 = vpop.f32.mrb[0].mxu0
        %v1231 = vadd.f32 %v1063, %v1230
        %v1232 = vpop.f32.mrb[0].mxu0
        %v1233 = vadd.f32 %v1067, %v1232
        %1234 = vmatprep.mubr.f32.mxu0 %v799
        %1235 = vmatmul.mubr.f32.gmra.mrb[0].mxu0 %v798
        %v1236 = vpop.f32.mrb[0].mxu0
        %v1237 = vadd.f32 %v1063, %v1236
        %v1238 = vpop.f32.mrb[0].mxu0
        %v1239 = vadd.f32 %v1067, %v1238
        %1240 = vdwg.mxu0
        %1241 = vmatprep.subr.mxu0 %v931
        %1242 = vmatpush1.msra.mxu0 %v930
        %1243 = vmatprep.subr.mxu0 %v935
        %1244 = vmatpush1.msra.mxu0 %v934
        %1245 = vmatprep.subr.mxu0 %v939
        %1246 = vmatpush1.msra.mxu0 %v938
        %1247 = vmatprep.subr.mxu0 %v943
        %1248 = vmatpush1.msra.mxu0 %v942
        %1249 = vmatprep.subr.mxu0 %v947
        %1250 = vmatpush1.msra.mxu0 %v946
        %1251 = vmatprep.subr.mxu0 %v951
        %1252 = vmatpush1.msra.mxu0 %v950
        %1253 = vmatprep.subr.mxu0 %v955
        %1254 = vmatpush1.msra.mxu0 %v954
        %1255 = vmatprep.subr.mxu0 %v959
        %1256 = vmatpush1.msra.mxu0 %v958
        %1257 = vmatprep.subr.mxu0 %v963
        %1258 = vmatpush1.msra.mxu0 %v962
        %1259 = vmatprep.subr.mxu0 %v967
        %1260 = vmatpush1.msra.mxu0 %v966
        %1261 = vmatprep.subr.mxu0 %v971
        %1262 = vmatpush1.msra.mxu0 %v970
        %1263 = vmatprep.subr.mxu0 %v975
        %1264 = vmatpush1.msra.mxu0 %v974
        %1265 = vmatprep.subr.mxu0 %v979
        %1266 = vmatpush1.msra.mxu0 %v978
        %1267 = vmatprep.subr.mxu0 %v983
        %1268 = vmatpush1.msra.mxu0 %v982
        %1269 = vmatprep.subr.mxu0 %v987
        %1270 = vmatpush1.msra.mxu0 %v986
        %1271 = vmatprep.subr.mxu0 %v991
        %1272 = vmatpush1.msra.mxu0 %v990
        %1273 = vmatprep.subr.mxu0 %v995
        %1274 = vmatpush1.msra.mxu0 %v994
        %1275 = vmatprep.subr.mxu0 %v999
        %1276 = vmatpush1.msra.mxu0 %v998
        %1277 = vmatprep.subr.mxu0 %v1003
        %1278 = vmatpush1.msra.mxu0 %v1002
        %1279 = vmatprep.subr.mxu0 %v1007
        %1280 = vmatpush1.msra.mxu0 %v1006
        %1281 = vmatprep.subr.mxu0 %v1011
        %1282 = vmatpush1.msra.mxu0 %v1010
        %1283 = vmatprep.subr.mxu0 %v1015
        %1284 = vmatpush1.msra.mxu0 %v1014
        %1285 = vmatprep.subr.mxu0 %v1019
        %1286 = vmatpush1.msra.mxu0 %v1018
        %1287 = vmatprep.subr.mxu0 %v1023
        %1288 = vmatpush1.msra.mxu0 %v1022
        %1289 = vmatprep.subr.mxu0 %v1027
        %1290 = vmatpush1.msra.mxu0 %v1026
        %1291 = vmatprep.subr.mxu0 %v1031
        %1292 = vmatpush1.msra.mxu0 %v1030
        %1293 = vmatprep.subr.mxu0 %v1035
        %1294 = vmatpush1.msra.mxu0 %v1034
        %1295 = vmatprep.subr.mxu0 %v1039
        %1296 = vmatpush1.msra.mxu0 %v1038
        %1297 = vmatprep.subr.mxu0 %v1043
        %1298 = vmatpush1.msra.mxu0 %v1042
        %1299 = vmatprep.subr.mxu0 %v1047
        %1300 = vmatpush1.msra.mxu0 %v1046
        %1301 = vmatprep.subr.mxu0 %v1051
        %1302 = vmatpush1.msra.mxu0 %v1050
        %1303 = vmatprep.subr.mxu0 %v1055
        %1304 = vmatpush1.msra.mxu0 %v1054
        %1305 = vmatprep.mubr.f32.mxu0 %v741
        %1306 = vmatmul.mubr.f32.gmra.mrb[0].mxu0 %v740
        %v1307 = vpop.f32.mrb[0].mxu0
        %v1308 = vadd.f32 %v1147, %v1307
        %v1309 = vpop.f32.mrb[0].mxu0
        %v1310 = vadd.f32 %v1149, %v1309
        %1311 = vmatprep.mubr.f32.mxu0 %v745
        %1312 = vmatmul.mubr.f32.gmra.mrb[0].mxu0 %v744
        %v1313 = vpop.f32.mrb[0].mxu0
        %v1314 = vadd.f32 %v1153, %v1313
        %v1315 = vpop.f32.mrb[0].mxu0
        %v1316 = vadd.f32 %v1155, %v1315
        %1317 = vmatprep.mubr.f32.mxu0 %v749
        %1318 = vmatmul.mubr.f32.gmra.mrb[0].mxu0 %v748
        %v1319 = vpop.f32.mrb[0].mxu0
        %v1320 = vadd.f32 %v1159, %v1319
        %v1321 = vpop.f32.mrb[0].mxu0
        %v1322 = vadd.f32 %v1161, %v1321
        %1323 = vmatprep.mubr.f32.mxu0 %v753
        %1324 = vmatmul.mubr.f32.gmra.mrb[0].mxu0 %v752
        %v1325 = vpop.f32.mrb[0].mxu0
        %v1326 = vadd.f32 %v1165, %v1325
        %v1327 = vpop.f32.mrb[0].mxu0
        %v1328 = vadd.f32 %v1167, %v1327
        %1329 = vmatprep.mubr.f32.mxu0 %v757
        %1330 = vmatmul.mubr.f32.gmra.mrb[0].mxu0 %v756
        %v1331 = vpop.f32.mrb[0].mxu0
        %v1332 = vadd.f32 %v1171, %v1331
        %v1333 = vpop.f32.mrb[0].mxu0
        %v1334 = vadd.f32 %v1173, %v1333
        %1335 = vmatprep.mubr.f32.mxu0 %v761
        %1336 = vmatmul.mubr.f32.gmra.mrb[0].mxu0 %v760
        %v1337 = vpop.f32.mrb[0].mxu0
        %v1338 = vadd.f32 %v1177, %v1337
        %v1339 = vpop.f32.mrb[0].mxu0
        %v1340 = vadd.f32 %v1179, %v1339
        %1341 = vmatprep.mubr.f32.mxu0 %v765
        %1342 = vmatmul.mubr.f32.gmra.mrb[0].mxu0 %v764
        %v1343 = vpop.f32.mrb[0].mxu0
        %v1344 = vadd.f32 %v1183, %v1343
        %v1345 = vpop.f32.mrb[0].mxu0
        %v1346 = vadd.f32 %v1185, %v1345
        %1347 = vmatprep.mubr.f32.mxu0 %v769
        %1348 = vmatmul.mubr.f32.gmra.mrb[0].mxu0 %v768
        %v1349 = vpop.f32.mrb[0].mxu0
        %v1350 = vadd.f32 %v1189, %v1349
        %v1351 = vpop.f32.mrb[0].mxu0
        %v1352 = vadd.f32 %v1191, %v1351
        %1353 = vmatprep.mubr.f32.mxu0 %v773
        %1354 = vmatmul.mubr.f32.gmra.mrb[0].mxu0 %v772
        %v1355 = vpop.f32.mrb[0].mxu0
        %v1356 = vadd.f32 %v1195, %v1355
        %v1357 = vpop.f32.mrb[0].mxu0
        %v1358 = vadd.f32 %v1197, %v1357
        %1359 = vmatprep.mubr.f32.mxu0 %v777
        %1360 = vmatmul.mubr.f32.gmra.mrb[0].mxu0 %v776
        %v1361 = vpop.f32.mrb[0].mxu0
        %v1362 = vadd.f32 %v1201, %v1361
        %v1363 = vpop.f32.mrb[0].mxu0
        %v1364 = vadd.f32 %v1203, %v1363
        %1365 = vmatprep.mubr.f32.mxu0 %v781
        %1366 = vmatmul.mubr.f32.gmra.mrb[0].mxu0 %v780
        %v1367 = vpop.f32.mrb[0].mxu0
        %v1368 = vadd.f32 %v1207, %v1367
        %v1369 = vpop.f32.mrb[0].mxu0
        %v1370 = vadd.f32 %v1209, %v1369
        %1371 = vmatprep.mubr.f32.mxu0 %v785
        %1372 = vmatmul.mubr.f32.gmra.mrb[0].mxu0 %v784
        %v1373 = vpop.f32.mrb[0].mxu0
        %v1374 = vadd.f32 %v1213, %v1373
        %v1375 = vpop.f32.mrb[0].mxu0
        %v1376 = vadd.f32 %v1215, %v1375
        %1377 = vmatprep.mubr.f32.mxu0 %v789
        %1378 = vmatmul.mubr.f32.gmra.mrb[0].mxu0 %v788
        %v1379 = vpop.f32.mrb[0].mxu0
        %v1380 = vadd.f32 %v1219, %v1379
        %v1381 = vpop.f32.mrb[0].mxu0
        %v1382 = vadd.f32 %v1221, %v1381
        %1383 = vmatprep.mubr.f32.mxu0 %v793
        %1384 = vmatmul.mubr.f32.gmra.mrb[0].mxu0 %v792
        %v1385 = vpop.f32.mrb[0].mxu0
        %v1386 = vadd.f32 %v1225, %v1385
        %v1387 = vpop.f32.mrb[0].mxu0
        %v1388 = vadd.f32 %v1227, %v1387
        %1389 = vmatprep.mubr.f32.mxu0 %v797
        %1390 = vmatmul.mubr.f32.gmra.mrb[0].mxu0 %v796
        %v1391 = vpop.f32.mrb[0].mxu0
        %v1392 = vadd.f32 %v1231, %v1391
        %v1393 = vpop.f32.mrb[0].mxu0
        %v1394 = vadd.f32 %v1233, %v1393
        %1395 = vmatprep.mubr.f32.mxu0 %v801
        %1396 = vmatmul.mubr.f32.gmra.mrb[0].mxu0 %v800
        %v1397 = vpop.f32.mrb[0].mxu0
        %v1398 = vadd.f32 %v1237, %v1397
        %v1399 = vpop.f32.mrb[0].mxu0
        %v1400 = vadd.f32 %v1239, %v1399
        %1401 = vdwg.mxu0
        %1402 = vmatprep.subr.mxu0 %v805
        %1403 = vmatpush1.msra.mxu0 %v804
        %1404 = vmatprep.subr.mxu0 %v809
        %1405 = vmatpush1.msra.mxu0 %v808
        %1406 = vmatprep.subr.mxu0 %v813
        %1407 = vmatpush1.msra.mxu0 %v812
        %1408 = vmatprep.subr.mxu0 %v817
        %1409 = vmatpush1.msra.mxu0 %v816
        %1410 = vmatprep.subr.mxu0 %v821
        %1411 = vmatpush1.msra.mxu0 %v820
        %1412 = vmatprep.subr.mxu0 %v825
        %1413 = vmatpush1.msra.mxu0 %v824
        %1414 = vmatprep.subr.mxu0 %v829
        %1415 = vmatpush1.msra.mxu0 %v828
        %1416 = vmatprep.subr.mxu0 %v833
        %1417 = vmatpush1.msra.mxu0 %v832
        %1418 = vmatprep.subr.mxu0 %v837
        %1419 = vmatpush1.msra.mxu0 %v836
        %1420 = vmatprep.subr.mxu0 %v841
        %1421 = vmatpush1.msra.mxu0 %v840
        %1422 = vmatprep.subr.mxu0 %v845
        %1423 = vmatpush1.msra.mxu0 %v844
        %1424 = vmatprep.subr.mxu0 %v849
        %1425 = vmatpush1.msra.mxu0 %v848
        %1426 = vmatprep.subr.mxu0 %v853
        %1427 = vmatpush1.msra.mxu0 %v852
        %1428 = vmatprep.subr.mxu0 %v857
        %1429 = vmatpush1.msra.mxu0 %v856
        %1430 = vmatprep.subr.mxu0 %v861
        %1431 = vmatpush1.msra.mxu0 %v860
        %1432 = vmatprep.subr.mxu0 %v865
        %1433 = vmatpush1.msra.mxu0 %v864
        %1434 = vmatprep.subr.mxu0 %v869
        %1435 = vmatpush1.msra.mxu0 %v868
        %1436 = vmatprep.subr.mxu0 %v873
        %1437 = vmatpush1.msra.mxu0 %v872
        %1438 = vmatprep.subr.mxu0 %v877
        %1439 = vmatpush1.msra.mxu0 %v876
        %1440 = vmatprep.subr.mxu0 %v881
        %1441 = vmatpush1.msra.mxu0 %v880
        %1442 = vmatprep.subr.mxu0 %v885
        %1443 = vmatpush1.msra.mxu0 %v884
        %1444 = vmatprep.subr.mxu0 %v889
        %1445 = vmatpush1.msra.mxu0 %v888
        %1446 = vmatprep.subr.mxu0 %v893
        %1447 = vmatpush1.msra.mxu0 %v892
        %1448 = vmatprep.subr.mxu0 %v897
        %1449 = vmatpush1.msra.mxu0 %v896
        %1450 = vmatprep.subr.mxu0 %v901
        %1451 = vmatpush1.msra.mxu0 %v900
        %1452 = vmatprep.subr.mxu0 %v905
        %1453 = vmatpush1.msra.mxu0 %v904
        %1454 = vmatprep.subr.mxu0 %v909
        %1455 = vmatpush1.msra.mxu0 %v908
        %1456 = vmatprep.subr.mxu0 %v913
        %1457 = vmatpush1.msra.mxu0 %v912
        %1458 = vmatprep.subr.mxu0 %v917
        %1459 = vmatpush1.msra.mxu0 %v916
        %1460 = vmatprep.subr.mxu0 %v921
        %1461 = vmatpush1.msra.mxu0 %v920
        %1462 = vmatprep.subr.mxu0 %v925
        %1463 = vmatpush1.msra.mxu0 %v924
        %1464 = vmatprep.subr.mxu0 %v929
        %1465 = vmatpush1.msra.mxu0 %v928
        %1466 = vmatprep.mubr.f32.mxu0 %v739
        %1467 = vmatmul.mubr.f32.gmra.mrb[0].mxu0 %v738
        %v1468 = vpop.f32.mrb[0].mxu0
        %v1469 = vadd.f32 %v1071, %v1468
        %v1470 = vpop.f32.mrb[0].mxu0
        %v1471 = vadd.f32 %v1075, %v1470
        %1472 = vmatprep.mubr.f32.mxu0 %v743
        %1473 = vmatmul.mubr.f32.gmra.mrb[0].mxu0 %v742
        %v1474 = vpop.f32.mrb[0].mxu0
        %v1475 = vadd.f32 %v1071, %v1474
        %v1476 = vpop.f32.mrb[0].mxu0
        %v1477 = vadd.f32 %v1075, %v1476
        %1478 = vmatprep.mubr.f32.mxu0 %v747
        %1479 = vmatmul.mubr.f32.gmra.mrb[0].mxu0 %v746
        %v1480 = vpop.f32.mrb[0].mxu0
        %v1481 = vadd.f32 %v1071, %v1480
        %v1482 = vpop.f32.mrb[0].mxu0
        %v1483 = vadd.f32 %v1075, %v1482
        %1484 = vmatprep.mubr.f32.mxu0 %v751
        %1485 = vmatmul.mubr.f32.gmra.mrb[0].mxu0 %v750
        %v1486 = vpop.f32.mrb[0].mxu0
        %v1487 = vadd.f32 %v1071, %v1486
        %v1488 = vpop.f32.mrb[0].mxu0
        %v1489 = vadd.f32 %v1075, %v1488
        %1490 = vmatprep.mubr.f32.mxu0 %v755
        %1491 = vmatmul.mubr.f32.gmra.mrb[0].mxu0 %v754
        %v1492 = vpop.f32.mrb[0].mxu0
        %v1493 = vadd.f32 %v1071, %v1492
        %v1494 = vpop.f32.mrb[0].mxu0
        %v1495 = vadd.f32 %v1075, %v1494
        %1496 = vmatprep.mubr.f32.mxu0 %v759
        %1497 = vmatmul.mubr.f32.gmra.mrb[0].mxu0 %v758
        %v1498 = vpop.f32.mrb[0].mxu0
        %v1499 = vadd.f32 %v1071, %v1498
        %v1500 = vpop.f32.mrb[0].mxu0
        %v1501 = vadd.f32 %v1075, %v1500
        %1502 = vmatprep.mubr.f32.mxu0 %v763
        %1503 = vmatmul.mubr.f32.gmra.mrb[0].mxu0 %v762
        %v1504 = vpop.f32.mrb[0].mxu0
        %v1505 = vadd.f32 %v1071, %v1504
        %v1506 = vpop.f32.mrb[0].mxu0
        %v1507 = vadd.f32 %v1075, %v1506
        %1508 = vmatprep.mubr.f32.mxu0 %v767
        %1509 = vmatmul.mubr.f32.gmra.mrb[0].mxu0 %v766
        %v1510 = vpop.f32.mrb[0].mxu0
        %v1511 = vadd.f32 %v1071, %v1510
        %v1512 = vpop.f32.mrb[0].mxu0
        %v1513 = vadd.f32 %v1075, %v1512
        %1514 = vmatprep.mubr.f32.mxu0 %v771
        %1515 = vmatmul.mubr.f32.gmra.mrb[0].mxu0 %v770
        %v1516 = vpop.f32.mrb[0].mxu0
        %v1517 = vadd.f32 %v1071, %v1516
        %v1518 = vpop.f32.mrb[0].mxu0
        %v1519 = vadd.f32 %v1075, %v1518
        %1520 = vmatprep.mubr.f32.mxu0 %v775
        %1521 = vmatmul.mubr.f32.gmra.mrb[0].mxu0 %v774
        %v1522 = vpop.f32.mrb[0].mxu0
        %v1523 = vadd.f32 %v1071, %v1522
        %v1524 = vpop.f32.mrb[0].mxu0
        %v1525 = vadd.f32 %v1075, %v1524
        %1526 = vmatprep.mubr.f32.mxu0 %v779
        %1527 = vmatmul.mubr.f32.gmra.mrb[0].mxu0 %v778
        %v1528 = vpop.f32.mrb[0].mxu0
        %v1529 = vadd.f32 %v1071, %v1528
        %v1530 = vpop.f32.mrb[0].mxu0
        %v1531 = vadd.f32 %v1075, %v1530
        %1532 = vmatprep.mubr.f32.mxu0 %v783
        %1533 = vmatmul.mubr.f32.gmra.mrb[0].mxu0 %v782
        %v1534 = vpop.f32.mrb[0].mxu0
        %v1535 = vadd.f32 %v1071, %v1534
        %v1536 = vpop.f32.mrb[0].mxu0
        %v1537 = vadd.f32 %v1075, %v1536
        %1538 = vmatprep.mubr.f32.mxu0 %v787
        %1539 = vmatmul.mubr.f32.gmra.mrb[0].mxu0 %v786
        %v1540 = vpop.f32.mrb[0].mxu0
        %v1541 = vadd.f32 %v1071, %v1540
        %v1542 = vpop.f32.mrb[0].mxu0
        %v1543 = vadd.f32 %v1075, %v1542
        %1544 = vmatprep.mubr.f32.mxu0 %v791
        %1545 = vmatmul.mubr.f32.gmra.mrb[0].mxu0 %v790
        %v1546 = vpop.f32.mrb[0].mxu0
        %v1547 = vadd.f32 %v1071, %v1546
        %v1548 = vpop.f32.mrb[0].mxu0
        %v1549 = vadd.f32 %v1075, %v1548
        %1550 = vmatprep.mubr.f32.mxu0 %v795
        %1551 = vmatmul.mubr.f32.gmra.mrb[0].mxu0 %v794
        %v1552 = vpop.f32.mrb[0].mxu0
        %v1553 = vadd.f32 %v1071, %v1552
        %v1554 = vpop.f32.mrb[0].mxu0
        %v1555 = vadd.f32 %v1075, %v1554
        %1556 = vmatprep.mubr.f32.mxu0 %v799
        %1557 = vmatmul.mubr.f32.gmra.mrb[0].mxu0 %v798
        %v1558 = vpop.f32.mrb[0].mxu0
        %v1559 = vadd.f32 %v1071, %v1558
        %v1560 = vpop.f32.mrb[0].mxu0
        %v1561 = vadd.f32 %v1075, %v1560
        %1562 = vdwg.mxu0
        %1563 = vmatprep.subr.mxu0 %v933
        %1564 = vmatpush1.msra.mxu0 %v932
        %1565 = vmatprep.subr.mxu0 %v937
        %1566 = vmatpush1.msra.mxu0 %v936
        %1567 = vmatprep.subr.mxu0 %v941
        %1568 = vmatpush1.msra.mxu0 %v940
        %1569 = vmatprep.subr.mxu0 %v945
        %1570 = vmatpush1.msra.mxu0 %v944
        %1571 = vmatprep.subr.mxu0 %v949
        %1572 = vmatpush1.msra.mxu0 %v948
        %1573 = vmatprep.subr.mxu0 %v953
        %1574 = vmatpush1.msra.mxu0 %v952
        %1575 = vmatprep.subr.mxu0 %v957
        %1576 = vmatpush1.msra.mxu0 %v956
        %1577 = vmatprep.subr.mxu0 %v961
        %1578 = vmatpush1.msra.mxu0 %v960
        %1579 = vmatprep.subr.mxu0 %v965
        %1580 = vmatpush1.msra.mxu0 %v964
        %1581 = vmatprep.subr.mxu0 %v969
        %1582 = vmatpush1.msra.mxu0 %v968
        %1583 = vmatprep.subr.mxu0 %v973
        %1584 = vmatpush1.msra.mxu0 %v972
        %1585 = vmatprep.subr.mxu0 %v977
        %1586 = vmatpush1.msra.mxu0 %v976
        %1587 = vmatprep.subr.mxu0 %v981
        %1588 = vmatpush1.msra.mxu0 %v980
        %1589 = vmatprep.subr.mxu0 %v985
        %1590 = vmatpush1.msra.mxu0 %v984
        %1591 = vmatprep.subr.mxu0 %v989
        %1592 = vmatpush1.msra.mxu0 %v988
        %1593 = vmatprep.subr.mxu0 %v993
        %1594 = vmatpush1.msra.mxu0 %v992
        %1595 = vmatprep.subr.mxu0 %v997
        %1596 = vmatpush1.msra.mxu0 %v996
        %1597 = vmatprep.subr.mxu0 %v1001
        %1598 = vmatpush1.msra.mxu0 %v1000
        %1599 = vmatprep.subr.mxu0 %v1005
        %1600 = vmatpush1.msra.mxu0 %v1004
        %1601 = vmatprep.subr.mxu0 %v1009
        %1602 = vmatpush1.msra.mxu0 %v1008
        %1603 = vmatprep.subr.mxu0 %v1013
        %1604 = vmatpush1.msra.mxu0 %v1012
        %1605 = vmatprep.subr.mxu0 %v1017
        %1606 = vmatpush1.msra.mxu0 %v1016
        %1607 = vmatprep.subr.mxu0 %v1021
        %1608 = vmatpush1.msra.mxu0 %v1020
        %1609 = vmatprep.subr.mxu0 %v1025
        %1610 = vmatpush1.msra.mxu0 %v1024
        %1611 = vmatprep.subr.mxu0 %v1029
        %1612 = vmatpush1.msra.mxu0 %v1028
        %1613 = vmatprep.subr.mxu0 %v1033
        %1614 = vmatpush1.msra.mxu0 %v1032
        %1615 = vmatprep.subr.mxu0 %v1037
        %1616 = vmatpush1.msra.mxu0 %v1036
        %1617 = vmatprep.subr.mxu0 %v1041
        %1618 = vmatpush1.msra.mxu0 %v1040
        %1619 = vmatprep.subr.mxu0 %v1045
        %1620 = vmatpush1.msra.mxu0 %v1044
        %1621 = vmatprep.subr.mxu0 %v1049
        %1622 = vmatpush1.msra.mxu0 %v1048
        %1623 = vmatprep.subr.mxu0 %v1053
        %1624 = vmatpush1.msra.mxu0 %v1052
        %1625 = vmatprep.subr.mxu0 %v1057
        %1626 = vmatpush1.msra.mxu0 %v1056
        %1627 = vmatprep.mubr.f32.mxu0 %v741
        %1628 = vmatmul.mubr.f32.gmra.mrb[0].mxu0 %v740
        %v1629 = vpop.f32.mrb[0].mxu0
        %v1630 = vadd.f32 %v1469, %v1629
        %v1631 = vpop.f32.mrb[0].mxu0
        %v1632 = vadd.f32 %v1471, %v1631
        %1633 = vmatprep.mubr.f32.mxu0 %v745
        %1634 = vmatmul.mubr.f32.gmra.mrb[0].mxu0 %v744
        %v1635 = vpop.f32.mrb[0].mxu0
        %v1636 = vadd.f32 %v1475, %v1635
        %v1637 = vpop.f32.mrb[0].mxu0
        %v1638 = vadd.f32 %v1477, %v1637
        %1639 = vmatprep.mubr.f32.mxu0 %v749
        %1640 = vmatmul.mubr.f32.gmra.mrb[0].mxu0 %v748
        %v1641 = vpop.f32.mrb[0].mxu0
        %v1642 = vadd.f32 %v1481, %v1641
        %v1643 = vpop.f32.mrb[0].mxu0
        %v1644 = vadd.f32 %v1483, %v1643
        %1645 = vmatprep.mubr.f32.mxu0 %v753
        %1646 = vmatmul.mubr.f32.gmra.mrb[0].mxu0 %v752
        %v1647 = vpop.f32.mrb[0].mxu0
        %v1648 = vadd.f32 %v1487, %v1647
        %v1649 = vpop.f32.mrb[0].mxu0
        %v1650 = vadd.f32 %v1489, %v1649
        %1651 = vmatprep.mubr.f32.mxu0 %v757
        %1652 = vmatmul.mubr.f32.gmra.mrb[0].mxu0 %v756
        %v1653 = vpop.f32.mrb[0].mxu0
        %v1654 = vadd.f32 %v1493, %v1653
        %v1655 = vpop.f32.mrb[0].mxu0
        %v1656 = vadd.f32 %v1495, %v1655
        %1657 = vmatprep.mubr.f32.mxu0 %v761
        %1658 = vmatmul.mubr.f32.gmra.mrb[0].mxu0 %v760
        %v1659 = vpop.f32.mrb[0].mxu0
        %v1660 = vadd.f32 %v1499, %v1659
        %v1661 = vpop.f32.mrb[0].mxu0
        %v1662 = vadd.f32 %v1501, %v1661
        %1663 = vmatprep.mubr.f32.mxu0 %v765
        %1664 = vmatmul.mubr.f32.gmra.mrb[0].mxu0 %v764
        %v1665 = vpop.f32.mrb[0].mxu0
        %v1666 = vadd.f32 %v1505, %v1665
        %v1667 = vpop.f32.mrb[0].mxu0
        %v1668 = vadd.f32 %v1507, %v1667
        %1669 = vmatprep.mubr.f32.mxu0 %v769
        %1670 = vmatmul.mubr.f32.gmra.mrb[0].mxu0 %v768
        %v1671 = vpop.f32.mrb[0].mxu0
        %v1672 = vadd.f32 %v1511, %v1671
        %v1673 = vpop.f32.mrb[0].mxu0
        %v1674 = vadd.f32 %v1513, %v1673
        %1675 = vmatprep.mubr.f32.mxu0 %v773
        %1676 = vmatmul.mubr.f32.gmra.mrb[0].mxu0 %v772
        %v1677 = vpop.f32.mrb[0].mxu0
        %v1678 = vadd.f32 %v1517, %v1677
        %v1679 = vpop.f32.mrb[0].mxu0
        %v1680 = vadd.f32 %v1519, %v1679
        %1681 = vmatprep.mubr.f32.mxu0 %v777
        %1682 = vmatmul.mubr.f32.gmra.mrb[0].mxu0 %v776
        %v1683 = vpop.f32.mrb[0].mxu0
        %v1684 = vadd.f32 %v1523, %v1683
        %v1685 = vpop.f32.mrb[0].mxu0
        %v1686 = vadd.f32 %v1525, %v1685
        %1687 = vmatprep.mubr.f32.mxu0 %v781
        %1688 = vmatmul.mubr.f32.gmra.mrb[0].mxu0 %v780
        %v1689 = vpop.f32.mrb[0].mxu0
        %v1690 = vadd.f32 %v1529, %v1689
        %v1691 = vpop.f32.mrb[0].mxu0
        %v1692 = vadd.f32 %v1531, %v1691
        %1693 = vmatprep.mubr.f32.mxu0 %v785
        %1694 = vmatmul.mubr.f32.gmra.mrb[0].mxu0 %v784
        %v1695 = vpop.f32.mrb[0].mxu0
        %v1696 = vadd.f32 %v1535, %v1695
        %v1697 = vpop.f32.mrb[0].mxu0
        %v1698 = vadd.f32 %v1537, %v1697
        %1699 = vmatprep.mubr.f32.mxu0 %v789
        %1700 = vmatmul.mubr.f32.gmra.mrb[0].mxu0 %v788
        %v1701 = vpop.f32.mrb[0].mxu0
        %v1702 = vadd.f32 %v1541, %v1701
        %v1703 = vpop.f32.mrb[0].mxu0
        %v1704 = vadd.f32 %v1543, %v1703
        %1705 = vmatprep.mubr.f32.mxu0 %v793
        %1706 = vmatmul.mubr.f32.gmra.mrb[0].mxu0 %v792
        %v1707 = vpop.f32.mrb[0].mxu0
        %v1708 = vadd.f32 %v1547, %v1707
        %v1709 = vpop.f32.mrb[0].mxu0
        %v1710 = vadd.f32 %v1549, %v1709
        %1711 = vmatprep.mubr.f32.mxu0 %v797
        %1712 = vmatmul.mubr.f32.gmra.mrb[0].mxu0 %v796
        %v1713 = vpop.f32.mrb[0].mxu0
        %v1714 = vadd.f32 %v1553, %v1713
        %v1715 = vpop.f32.mrb[0].mxu0
        %v1716 = vadd.f32 %v1555, %v1715
        %1717 = vmatprep.mubr.f32.mxu0 %v801
        %1718 = vmatmul.mubr.f32.gmra.mrb[0].mxu0 %v800
        %v1719 = vpop.f32.mrb[0].mxu0
        %v1720 = vadd.f32 %v1559, %v1719
        %v1721 = vpop.f32.mrb[0].mxu0
        %v1722 = vadd.f32 %v1561, %v1721
        %1723 = vdwg.mxu0
        %v1724 = vmax.f32 %v1308, 0.0
        %v1725 = vmax.f32 %v1310, 0.0
        %v1726 = vmax.f32 %v1630, 0.0
        %v1727 = vmax.f32 %v1632, 0.0
        %v1728 = vmax.f32 %v1314, 0.0
        %v1729 = vmax.f32 %v1316, 0.0
        %v1730 = vmax.f32 %v1636, 0.0
        %v1731 = vmax.f32 %v1638, 0.0
        %v1732 = vmax.f32 %v1320, 0.0
        %v1733 = vmax.f32 %v1322, 0.0
        %v1734 = vmax.f32 %v1642, 0.0
        %v1735 = vmax.f32 %v1644, 0.0
        %v1736 = vmax.f32 %v1326, 0.0
        %v1737 = vmax.f32 %v1328, 0.0
        %v1738 = vmax.f32 %v1648, 0.0
        %v1739 = vmax.f32 %v1650, 0.0
        %v1740 = vmax.f32 %v1332, 0.0
        %v1741 = vmax.f32 %v1334, 0.0
        %v1742 = vmax.f32 %v1654, 0.0
        %v1743 = vmax.f32 %v1656, 0.0
        %v1744 = vmax.f32 %v1338, 0.0
        %v1745 = vmax.f32 %v1340, 0.0
        %v1746 = vmax.f32 %v1660, 0.0
        %v1747 = vmax.f32 %v1662, 0.0
        %v1748 = vmax.f32 %v1344, 0.0
        %v1749 = vmax.f32 %v1346, 0.0
        %v1750 = vmax.f32 %v1666, 0.0
        %v1751 = vmax.f32 %v1668, 0.0
        %v1752 = vmax.f32 %v1350, 0.0
        %v1753 = vmax.f32 %v1352, 0.0
        %v1754 = vmax.f32 %v1672, 0.0
        %v1755 = vmax.f32 %v1674, 0.0
        %v1756 = vmax.f32 %v1356, 0.0
        %v1757 = vmax.f32 %v1358, 0.0
        %v1758 = vmax.f32 %v1678, 0.0
        %v1759 = vmax.f32 %v1680, 0.0
        %v1760 = vmax.f32 %v1362, 0.0
        %v1761 = vmax.f32 %v1364, 0.0
        %v1762 = vmax.f32 %v1684, 0.0
        %v1763 = vmax.f32 %v1686, 0.0
        %v1764 = vmax.f32 %v1368, 0.0
        %v1765 = vmax.f32 %v1370, 0.0
        %v1766 = vmax.f32 %v1690, 0.0
        %v1767 = vmax.f32 %v1692, 0.0
        %v1768 = vmax.f32 %v1374, 0.0
        %v1769 = vmax.f32 %v1376, 0.0
        %v1770 = vmax.f32 %v1696, 0.0
        %v1771 = vmax.f32 %v1698, 0.0
        %v1772 = vmax.f32 %v1380, 0.0
        %v1773 = vmax.f32 %v1382, 0.0
        %v1774 = vmax.f32 %v1702, 0.0
        %v1775 = vmax.f32 %v1704, 0.0
        %v1776 = vmax.f32 %v1386, 0.0
        %v1777 = vmax.f32 %v1388, 0.0
        %v1778 = vmax.f32 %v1708, 0.0
        %v1779 = vmax.f32 %v1710, 0.0
        %v1780 = vmax.f32 %v1392, 0.0
        %v1781 = vmax.f32 %v1394, 0.0
        %v1782 = vmax.f32 %v1714, 0.0
        %v1783 = vmax.f32 %v1716, 0.0
        %v1784 = vmax.f32 %v1398, 0.0
        %v1785 = vmax.f32 %v1400, 0.0
        %v1786 = vmax.f32 %v1720, 0.0
        %v1787 = vmax.f32 %v1722, 0.0
        %v1788 = vld [vmem:[%s5] sm:$0xf]
        %v1790 = vlaneseq
        %v1791 = vshrl.u32 %v1790, 7
        %v1792 = vsub.s32 0, %v1791
        %v1793 = vrot.slane %v1788, %v1792
        %v1794 = vlaneseq
        %v1795 = vshrl.u32 %v1794, 7
        %v1796 = vsub.s32 1, %v1795
        %v1797 = vrot.slane %v1788, %v1796
        %v1798 = vlaneseq
        %v1799 = vshrl.u32 %v1798, 7
        %v1800 = vsub.s32 2, %v1799
        %v1801 = vrot.slane %v1788, %v1800
        %v1802 = vlaneseq
        %v1803 = vshrl.u32 %v1802, 7
        %v1804 = vsub.s32 3, %v1803
        %v1805 = vrot.slane %v1788, %v1804
        %v1810 = vmul.f32 %v1724, %v1793
        %v1811 = vmul.f32 %v1725, %v1797
        %v1812 = vmul.f32 %v1726, %v1801
        %v1813 = vmul.f32 %v1727, %v1805
        %v1814 = vmul.f32 %v1728, %v1793
        %v1815 = vmul.f32 %v1729, %v1797
        %v1816 = vmul.f32 %v1730, %v1801
        %v1817 = vmul.f32 %v1731, %v1805
        %v1818 = vmul.f32 %v1732, %v1793
        %v1819 = vmul.f32 %v1733, %v1797
        %v1820 = vmul.f32 %v1734, %v1801
        %v1821 = vmul.f32 %v1735, %v1805
        %v1822 = vmul.f32 %v1736, %v1793
        %v1823 = vmul.f32 %v1737, %v1797
        %v1824 = vmul.f32 %v1738, %v1801
        %v1825 = vmul.f32 %v1739, %v1805
        %v1826 = vmul.f32 %v1740, %v1793
        %v1827 = vmul.f32 %v1741, %v1797
        %v1828 = vmul.f32 %v1742, %v1801
        %v1829 = vmul.f32 %v1743, %v1805
        %v1830 = vmul.f32 %v1744, %v1793
        %v1831 = vmul.f32 %v1745, %v1797
        %v1832 = vmul.f32 %v1746, %v1801
        %v1833 = vmul.f32 %v1747, %v1805
        %v1834 = vmul.f32 %v1748, %v1793
        %v1835 = vmul.f32 %v1749, %v1797
        %v1836 = vmul.f32 %v1750, %v1801
        %v1837 = vmul.f32 %v1751, %v1805
        %v1838 = vmul.f32 %v1752, %v1793
        %v1839 = vmul.f32 %v1753, %v1797
        %v1840 = vmul.f32 %v1754, %v1801
        %v1841 = vmul.f32 %v1755, %v1805
        %v1842 = vmul.f32 %v1756, %v1793
        %v1843 = vmul.f32 %v1757, %v1797
        %v1844 = vmul.f32 %v1758, %v1801
        %v1845 = vmul.f32 %v1759, %v1805
        %v1846 = vmul.f32 %v1760, %v1793
        %v1847 = vmul.f32 %v1761, %v1797
        %v1848 = vmul.f32 %v1762, %v1801
        %v1849 = vmul.f32 %v1763, %v1805
        %v1850 = vmul.f32 %v1764, %v1793
        %v1851 = vmul.f32 %v1765, %v1797
        %v1852 = vmul.f32 %v1766, %v1801
        %v1853 = vmul.f32 %v1767, %v1805
        %v1854 = vmul.f32 %v1768, %v1793
        %v1855 = vmul.f32 %v1769, %v1797
        %v1856 = vmul.f32 %v1770, %v1801
        %v1857 = vmul.f32 %v1771, %v1805
        %v1858 = vmul.f32 %v1772, %v1793
        %v1859 = vmul.f32 %v1773, %v1797
        %v1860 = vmul.f32 %v1774, %v1801
        %v1861 = vmul.f32 %v1775, %v1805
        %v1862 = vmul.f32 %v1776, %v1793
        %v1863 = vmul.f32 %v1777, %v1797
        %v1864 = vmul.f32 %v1778, %v1801
        %v1865 = vmul.f32 %v1779, %v1805
        %v1866 = vmul.f32 %v1780, %v1793
        %v1867 = vmul.f32 %v1781, %v1797
        %v1868 = vmul.f32 %v1782, %v1801
        %v1869 = vmul.f32 %v1783, %v1805
        %v1870 = vmul.f32 %v1784, %v1793
        %v1871 = vmul.f32 %v1785, %v1797
        %v1872 = vmul.f32 %v1786, %v1801
        %v1873 = vmul.f32 %v1787, %v1805
        %v1874 = vadd.f32 %v1810, %v1811
        %v1875 = vadd.f32 %v1874, %v1812
        %v1876 = vadd.f32 %v1875, %v1813
        %1877 = vadd.xlane.f32.xlu0 %v1876
        %v1878 = vpop.xlane.xlu0 %1877
        %v1879 = vadd.f32 %v1814, %v1815
        %v1880 = vadd.f32 %v1879, %v1816
        %v1881 = vadd.f32 %v1880, %v1817
        %1882 = vadd.xlane.f32.xlu0 %v1881
        %v1883 = vpop.xlane.xlu0 %1882
        %v1884 = vadd.f32 %v1818, %v1819
        %v1885 = vadd.f32 %v1884, %v1820
        %v1886 = vadd.f32 %v1885, %v1821
        %1887 = vadd.xlane.f32.xlu0 %v1886
        %v1888 = vpop.xlane.xlu0 %1887
        %v1889 = vadd.f32 %v1822, %v1823
        %v1890 = vadd.f32 %v1889, %v1824
        %v1891 = vadd.f32 %v1890, %v1825
        %1892 = vadd.xlane.f32.xlu0 %v1891
        %v1893 = vpop.xlane.xlu0 %1892
        %v1894 = vadd.f32 %v1826, %v1827
        %v1895 = vadd.f32 %v1894, %v1828
        %v1896 = vadd.f32 %v1895, %v1829
        %1897 = vadd.xlane.f32.xlu0 %v1896
        %v1898 = vpop.xlane.xlu0 %1897
        %v1899 = vadd.f32 %v1830, %v1831
        %v1900 = vadd.f32 %v1899, %v1832
        %v1901 = vadd.f32 %v1900, %v1833
        %1902 = vadd.xlane.f32.xlu0 %v1901
        %v1903 = vpop.xlane.xlu0 %1902
        %v1904 = vadd.f32 %v1834, %v1835
        %v1905 = vadd.f32 %v1904, %v1836
        %v1906 = vadd.f32 %v1905, %v1837
        %1907 = vadd.xlane.f32.xlu0 %v1906
        %v1908 = vpop.xlane.xlu0 %1907
        %v1909 = vadd.f32 %v1838, %v1839
        %v1910 = vadd.f32 %v1909, %v1840
        %v1911 = vadd.f32 %v1910, %v1841
        %1912 = vadd.xlane.f32.xlu0 %v1911
        %v1913 = vpop.xlane.xlu0 %1912
        %v1914 = vadd.f32 %v1842, %v1843
        %v1915 = vadd.f32 %v1914, %v1844
        %v1916 = vadd.f32 %v1915, %v1845
        %1917 = vadd.xlane.f32.xlu0 %v1916
        %v1918 = vpop.xlane.xlu0 %1917
        %v1919 = vadd.f32 %v1846, %v1847
        %v1920 = vadd.f32 %v1919, %v1848
        %v1921 = vadd.f32 %v1920, %v1849
        %1922 = vadd.xlane.f32.xlu0 %v1921
        %v1923 = vpop.xlane.xlu0 %1922
        %v1924 = vadd.f32 %v1850, %v1851
        %v1925 = vadd.f32 %v1924, %v1852
        %v1926 = vadd.f32 %v1925, %v1853
        %1927 = vadd.xlane.f32.xlu0 %v1926
        %v1928 = vpop.xlane.xlu0 %1927
        %v1929 = vadd.f32 %v1854, %v1855
        %v1930 = vadd.f32 %v1929, %v1856
        %v1931 = vadd.f32 %v1930, %v1857
        %1932 = vadd.xlane.f32.xlu0 %v1931
        %v1933 = vpop.xlane.xlu0 %1932
        %v1934 = vadd.f32 %v1858, %v1859
        %v1935 = vadd.f32 %v1934, %v1860
        %v1936 = vadd.f32 %v1935, %v1861
        %1937 = vadd.xlane.f32.xlu0 %v1936
        %v1938 = vpop.xlane.xlu0 %1937
        %v1939 = vadd.f32 %v1862, %v1863
        %v1940 = vadd.f32 %v1939, %v1864
        %v1941 = vadd.f32 %v1940, %v1865
        %1942 = vadd.xlane.f32.xlu0 %v1941
        %v1943 = vpop.xlane.xlu0 %1942
        %v1944 = vadd.f32 %v1866, %v1867
        %v1945 = vadd.f32 %v1944, %v1868
        %v1946 = vadd.f32 %v1945, %v1869
        %1947 = vadd.xlane.f32.xlu0 %v1946
        %v1948 = vpop.xlane.xlu0 %1947
        %v1949 = vadd.f32 %v1870, %v1871
        %v1950 = vadd.f32 %v1949, %v1872
        %v1951 = vadd.f32 %v1950, %v1873
        %1952 = vadd.xlane.f32.xlu0 %v1951
        %v1953 = vpop.xlane.xlu0 %1952
        %v1954 = vld [vmem:[#allocation2] sm:$0x1]
        %v1956 = vlaneseq
        %v1957 = vshrl.u32 %v1956, 7
        %v1958 = vsub.s32 0, %v1957
        %v1959 = vrot.slane %v1954, %v1958
        %v1961 = vadd.f32 %v1878, %v1959
        %v1962 = vadd.f32 %v1883, %v1959
        %v1963 = vadd.f32 %v1888, %v1959
        %v1964 = vadd.f32 %v1893, %v1959
        %v1965 = vadd.f32 %v1898, %v1959
        %v1966 = vadd.f32 %v1903, %v1959
        %v1967 = vadd.f32 %v1908, %v1959
        %v1968 = vadd.f32 %v1913, %v1959
        %v1969 = vadd.f32 %v1918, %v1959
        %v1970 = vadd.f32 %v1923, %v1959
        %v1971 = vadd.f32 %v1928, %v1959
        %v1972 = vadd.f32 %v1933, %v1959
        %v1973 = vadd.f32 %v1938, %v1959
        %v1974 = vadd.f32 %v1943, %v1959
        %v1975 = vadd.f32 %v1948, %v1959
        %v1976 = vadd.f32 %v1953, %v1959
        %vm1977 = vcmask 7168
        %1978 = vst.msk [vmem:[%s312] sm:$0xff] %vm1977, %v1961
        %1979 = vst.msk [vmem:[%s312 + $0x8] sm:$0xff] %vm1977, %v1962
        %1980 = vst.msk [vmem:[%s312 + $0x10] sm:$0xff] %vm1977, %v1963
        %1981 = vst.msk [vmem:[%s312 + $0x18] sm:$0xff] %vm1977, %v1964
        %1982 = vst.msk [vmem:[%s312 + $0x20] sm:$0xff] %vm1977, %v1965
        %1983 = vst.msk [vmem:[%s312 + $0x28] sm:$0xff] %vm1977, %v1966
        %1984 = vst.msk [vmem:[%s312 + $0x30] sm:$0xff] %vm1977, %v1967
        %1985 = vst.msk [vmem:[%s312 + $0x38] sm:$0xff] %vm1977, %v1968
        %1986 = vst.msk [vmem:[%s312 + $0x40] sm:$0xff] %vm1977, %v1969
        %1987 = vst.msk [vmem:[%s312 + $0x48] sm:$0xff] %vm1977, %v1970
        %1988 = vst.msk [vmem:[%s312 + $0x50] sm:$0xff] %vm1977, %v1971
        %1989 = vst.msk [vmem:[%s312 + $0x58] sm:$0xff] %vm1977, %v1972
        %1990 = vst.msk [vmem:[%s312 + $0x60] sm:$0xff] %vm1977, %v1973
        %1991 = vst.msk [vmem:[%s312 + $0x68] sm:$0xff] %vm1977, %v1974
        %1992 = vst.msk [vmem:[%s312 + $0x70] sm:$0xff] %vm1977, %v1975
        %1993 = vst.msk [vmem:[%s312 + $0x78] sm:$0xff] %vm1977, %v1976
        %s1994 = smul.u32 16, %s22
        %p1995 = scmp.lt.s32.totalorder %s1994, 31
        %s1996 = scalar_select %p1995, %s1994, 31
        %s1997 = smul.addr %s1996, 8
        %s1998 = scalar_lea.vmem %s7, %s1997
        // Predicated region
        $region57: #{mlp_forward.1} parent=47 // pred_check
          %p1999 = pneg %p192
        $region58: #{mlp_forward.1} parent=47 // pred_check_branch
          %2001 = sbr.rel (%p1999) target = $region60
        $region59: #{mlp_forward.1} parent=47 // pred_region
          %s2002 = smul.u32 16, %s22
        $region60: #{mlp_forward.1} parent=47 // pred_fallthru
          _
      $region48: #{mlp_forward.1} parent=5 // pred_fallthru
        _
      %p2003 = scmp.le.s32.totalorder 2, %s17
      // Predicated region
      $region61: #{mlp_forward.1} parent=5 // pred_check
        %p2004 = pneg %p2003
      $region62: #{mlp_forward.1} parent=5 // pred_check_branch
        %2006 = sbr.rel (%p2004) target = $region64
      $region63: #{mlp_forward.1} parent=5 // pred_region
        %s2007 = ssub.s32 %s17, 2
        // Predicated region
        $region65: #{mlp_forward.1} parent=63 // pred_check
          %p2008 = pneg %p198
        $region66: #{mlp_forward.1} parent=63 // pred_check_branch
          %2010 = sbr.rel (%p2008) target = $region68
        $region67: #{mlp_forward.1} parent=63 // pred_region
          %s2011 = smul.u32 16, %s23
          %p2012 = scmp.lt.s32.totalorder %s2011, 31
          %s2013 = scalar_select %p2012, %s2011, 31
          %s2014 = smul.addr %s2013, 8
          %s2015 = scalar_lea.vmem %s7, %s2014
        $region68: #{mlp_forward.1} parent=63 // pred_fallthru
          _
      $region64: #{mlp_forward.1} parent=5 // pred_fallthru
        _
    $region6: #{mlp_forward.1} parent=1 // loop_footer
      %s21 = sadd.s32 1, %s17
    $region7: #{mlp_forward.1} parent=1 // loop_footer_branch
      %16 = sbr.rel target = $region3
    $region8: #{mlp_forward.1} parent=1 // loop_exit
      _
    %2016 = vsyncpa [#allocation4], 1
    %s2017 = scalar_lea.sflag [#allocation4], 1
    %2018 = vsyncpa %s2017, 1
    %2019 = vsyncpa [#allocation6], 1

</llo_original>
